<compile_context>
chip_gen: v7x
topology: tpu7x:2x2x1
jax: 0.10.0
libtpu: 0.0.40
codegen_flags: <defaults>
</compile_context>

<pallas_src>
import numpy as np
import jax
import jax.numpy as jnp
from jax import lax
from jax.experimental import pallas as pl
from jax.experimental.pallas import tpu as pltpu


def _round_up(x, m):
    return ((x + m - 1) // m) * m


def _pad2(a, rows, cols):
    return jnp.pad(a, ((0, rows - a.shape[0]), (0, cols - a.shape[1])))


_COMPILER_PARAMS = pltpu.CompilerParams(
    dimension_semantics=("arbitrary",),          # chunks are sequential (h carry)
    vmem_limit_bytes=64 * 1024 * 1024,
)


# ----------------------------------------------------------------------------
# Pallas kernels
# ----------------------------------------------------------------------------
def gru_encoder_kernel(x_ref, len_ref, wih_ref, bx_ref, whh_ref, bhn_ref,
                       wml_ref, bml_ref, eps_ref,
                       mean_ref, logv_ref, z_ref,
                       h_ref, gx_ref):
    """One time-chunk of the encoder GRU.  Hidden state is carried across
    chunks in h_ref; the fused head (hidden2mean|hidden2logv + reparam) runs
    only on the last chunk."""
    c = pl.program_id(0)
    T, B, threeH = gx_ref.shape
    H = threeH // 3
    L = eps_ref.shape[1]

    @pl.when(c == 0)
    def _init():
        h_ref[...] = jnp.zeros_like(h_ref)

    # Hoisted per-chunk input projection: one big bf16 MXU matmul (f32 acc)
    # off the serial recurrence path; b_ih (+ r/z parts of b_hh) pre-folded.
    gx = jnp.dot(x_ref[...], wih_ref[...], preferred_element_type=jnp.float32)
    gx_ref[...] = (gx + bx_ref[...]).reshape(T, B, threeH)

    lens = len_ref[...]                           # (B, 1) int32
    whh = whh_ref[...]                            # (H, 3H) bf16, packed (r|z|n)
    b_n = bhn_ref[...]                            # (1, H) f32 (b_hn)
    t0 = c * T

    def step(t, h_prev):
        gx_t = gx_ref[t]                          # (B, 3H)
        gh = jnp.dot(h_prev.astype(jnp.bfloat16), whh,
                     preferred_element_type=jnp.float32)
        r = jax.nn.sigmoid(gx_t[:, :H] + gh[:, :H])
        z = jax.nn.sigmoid(gx_t[:, H:2 * H] + gh[:, H:2 * H])
        n = jnp.tanh(gx_t[:, 2 * H:] + r * (gh[:, 2 * H:] + b_n))
        h_new = (1.0 - z) * n + z * h_prev
        return jnp.where(lens > t0 + t, h_new, h_prev)   # freeze finished seqs

    h = lax.fori_loop(0, T, step, h_ref[...], unroll=True)
    h_ref[...] = h

    @pl.when(c == pl.num_programs(0) - 1)
    def _head():
        # Fused encoder head: [mean | logv] in one packed matmul + reparam.
        ml = jnp.dot(h.astype(jnp.bfloat16), wml_ref[...],
                     preferred_element_type=jnp.float32) + bml_ref[...]
        mean = ml[:, :L]
        logv = ml[:, L:]
        mean_ref[...] = mean
        logv_ref[...] = logv
        z_ref[...] = eps_ref[...] * jnp.exp(0.5 * logv) + mean


def gru_decoder_kernel(x_ref, len_ref, wih_ref, bx_ref, whh_ref, bhn_ref,
                       wout_ref, bout_ref,
                       logp_ref,
                       h_ref, gx_ref, o_ref):
    """One time-chunk of the decoder GRU, fused with a per-chunk batched
    outputs2vocab + log_softmax.  The chunk is stored batch-major."""
    c = pl.program_id(0)
    T, B, threeH = gx_ref.shape
    H = threeH // 3
    V = bout_ref.shape[1]

    @pl.when(c == 0)
    def _init():
        h_ref[...] = jnp.zeros_like(h_ref)

    gx = jnp.dot(x_ref[...], wih_ref[...], preferred_element_type=jnp.float32)
    gx_ref[...] = (gx + bx_ref[...]).reshape(T, B, threeH)

    lens = len_ref[...]
    whh = whh_ref[...]
    b_n = bhn_ref[...]
    t0 = c * T

    def step(t, h_prev):
        gx_t = gx_ref[t]
        gh = jnp.dot(h_prev.astype(jnp.bfloat16), whh,
                     preferred_element_type=jnp.float32)
        r = jax.nn.sigmoid(gx_t[:, :H] + gh[:, :H])
        z = jax.nn.sigmoid(gx_t[:, H:2 * H] + gh[:, H:2 * H])
        n = jnp.tanh(gx_t[:, 2 * H:] + r * (gh[:, 2 * H:] + b_n))
        h_new = (1.0 - z) * n + z * h_prev
        valid = lens > t0 + t
        o_ref[t] = jnp.where(valid, h_new, 0.0)   # pad_packed_sequence zeros
        return jnp.where(valid, h_new, h_prev)

    h_ref[...] = lax.fori_loop(0, T, step, h_ref[...], unroll=True)

    # Batched vocab projection + log_softmax for the whole chunk (one MXU
    # matmul, off the serial recurrence chain).  Padded vocab columns carry a
    # -1e30 bias, so they vanish from the normalization.
    o = o_ref[...].reshape(T * B, H).astype(jnp.bfloat16)
    logits = jnp.dot(o, wout_ref[...],
                     preferred_element_type=jnp.float32) + bout_ref[...]
    m = jnp.max(logits, axis=-1, keepdims=True)
    lse = jnp.log(jnp.sum(jnp.exp(logits - m), axis=-1, keepdims=True)) + m
    logp = logits - lse                           # (T*B, V), rows are t-major

    # Scatter time-major rows into the batch-major output block so the wrapper
    # never transposes the (B, S, V) tensor.
    for t in range(T):                            # static chunk length
        logp_ref[:, t, :] = logp[t * B:(t + 1) * B, :]


# ----------------------------------------------------------------------------
# pallas_call wrappers
# ----------------------------------------------------------------------------
def run_encoder(x_emb, lens, params, eps_pad, t_chunk):
    SB, E = x_emb.shape
    B_pad = lens.shape[0]
    S = SB // B_pad
    g = params["enc_gru"]
    H_pad = g["whh"].shape[0]
    L_pad = eps_pad.shape[1]
    n_chunks = S // t_chunk
    const = lambda c: (0, 0)
    return pl.pallas_call(
        gru_encoder_kernel,
        grid=(n_chunks,),
        in_specs=[
            pl.BlockSpec((t_chunk * B_pad, E), lambda c: (c, 0)),   # streamed
            pl.BlockSpec(lens.shape, const),
            pl.BlockSpec(g["wih"].shape, const),
            pl.BlockSpec(g["bx"].shape, const),
            pl.BlockSpec(g["whh"].shape, const),
            pl.BlockSpec(g["bhn"].shape, const),
            pl.BlockSpec(params["wml"].shape, const),
            pl.BlockSpec(params["bml"].shape, const),
            pl.BlockSpec(eps_pad.shape, const),
        ],
        out_specs=(pl.BlockSpec((B_pad, L_pad), const),) * 3,
        out_shape=(jax.ShapeDtypeStruct((B_pad, L_pad), jnp.float32),) * 3,
        scratch_shapes=[
            pltpu.VMEM((B_pad, H_pad), jnp.float32),                 # h carry
            pltpu.VMEM((t_chunk, B_pad, 3 * H_pad), jnp.float32),    # gx chunk
        ],
        compiler_params=_COMPILER_PARAMS,
    )(x_emb, lens, g["wih"], g["bx"], g["whh"], g["bhn"],
      params["wml"], params["bml"], eps_pad)


def run_decoder(x_emb, lens, params, t_chunk):
    SB, E = x_emb.shape
    B_pad = lens.shape[0]
    S = SB // B_pad
    g = params["dec_gru"]
    H_pad = g["whh"].shape[0]
    V_pad = params["b_out"].shape[1]
    n_chunks = S // t_chunk
    const = lambda c: (0, 0)
    return pl.pallas_call(
        gru_decoder_kernel,
        grid=(n_chunks,),
        in_specs=[
            pl.BlockSpec((t_chunk * B_pad, E), lambda c: (c, 0)),   # streamed
            pl.BlockSpec(lens.shape, const),
            pl.BlockSpec(g["wih"].shape, const),
            pl.BlockSpec(g["bx"].shape, const),
            pl.BlockSpec(g["whh"].shape, const),
            pl.BlockSpec(g["bhn"].shape, const),
            pl.BlockSpec(params["w_out"].shape, const),
            pl.BlockSpec(params["b_out"].shape, const),
        ],
        out_specs=pl.BlockSpec((B_pad, t_chunk, V_pad), lambda c: (0, c, 0)),
        out_shape=jax.ShapeDtypeStruct((B_pad, S, V_pad), jnp.float32),
        scratch_shapes=[
            pltpu.VMEM((B_pad, H_pad), jnp.float32),                 # h carry
            pltpu.VMEM((t_chunk, B_pad, 3 * H_pad), jnp.float32),    # gx chunk
            pltpu.VMEM((t_chunk, B_pad, H_pad), jnp.float32),        # masked h_t
        ],
        compiler_params=_COMPILER_PARAMS,
    )(x_emb, lens, g["wih"], g["bx"], g["whh"], g["bhn"],
      params["w_out"], params["b_out"])


# ----------------------------------------------------------------------------
# Parameter construction (deterministic, matches PyTorch module shapes)
# ----------------------------------------------------------------------------
def pack_gru_params(key, E, H, H_pad):
    """PyTorch nn.GRU weights (3H,E)/(3H,H), gate order (r,z,n), repacked to
    lane-packed, gate-tile-aligned (E,3*H_pad)/(H_pad,3*H_pad) and pre-cast to
    bf16.  b_ih and the r/z parts of b_hh are folded into the hoisted input
    projection bias; only b_hn stays in the recurrence.  Zero padding keeps
    the padded hidden lanes identically 0 through the recurrence."""
    k = 1.0 / np.sqrt(H)
    ks = jax.random.split(key, 4)
    w_ih = jax.random.uniform(ks[0], (3 * H, E), jnp.float32, -k, k)
    w_hh = jax.random.uniform(ks[1], (3 * H, H), jnp.float32, -k, k)
    b_ih = jax.random.uniform(ks[2], (3 * H,), jnp.float32, -k, k)
    b_hh = jax.random.uniform(ks[3], (3 * H,), jnp.float32, -k, k)
    b_x = b_ih + jnp.concatenate([b_hh[:2 * H], jnp.zeros((H,), jnp.float32)])

    def gates_cols(w_t, rows_pad):               # w_t: (rows, 3H) cols [r|z|n]
        blocks = [_pad2(w_t[:, g * H:(g + 1) * H], rows_pad, H_pad)
                  for g in range(3)]
        return jnp.concatenate(blocks, axis=1)   # (rows_pad, 3*H_pad)

    return dict(
        wih=gates_cols(jnp.transpose(w_ih), E).astype(jnp.bfloat16),
        bx=gates_cols(b_x.reshape(1, 3 * H), 1),                 # f32
        whh=gates_cols(jnp.transpose(w_hh), H_pad).astype(jnp.bfloat16),
        bhn=_pad2(b_hh[2 * H:].reshape(1, H), 1, H_pad),         # f32
    )


def linear_params(key, in_dim, out_dim):
    k = 1.0 / np.sqrt(in_dim)
    k1, k2 = jax.random.split(key)
    w = jax.random.uniform(k1, (out_dim, in_dim), jnp.float32, -k, k)
    b = jax.random.uniform(k2, (out_dim,), jnp.float32, -k, k)
    return jnp.transpose(w), b.reshape(1, out_dim)               # (in,out),(1,out)


# ----------------------------------------------------------------------------
# Full forward (mirrors SentenceVAE.forward for num_layers=1, unidirectional)
# ----------------------------------------------------------------------------
def sentence_vae_forward(params, input_sequence, length, decoder_input, eps,
                         is_test=False, t_chunk=8):
    B, S = input_sequence.shape
    emb = params["embedding"]                     # (V, E) bf16
    E = emb.shape[1]
    V = params["vocab_size"]
    L = params["latent_size"]
    L_pad = params["L_pad"]
    B_pad = _round_up(B, 8)

    assert S % t_chunk == 0 and (t_chunk % 8 == 0 or t_chunk == S)

    # torch.sort(length, descending=True).  The sort only determines the ORDER
    # of the returned mean/logv/z; the recurrences mask by per-row length, so
    # the big token / embedding / logp tensors are never permuted.
    order = jnp.argsort(-length)
    inv_order = jnp.argsort(order)

    length_pad = jnp.zeros((B_pad, 1), jnp.int32).at[:B, 0].set(
        length.astype(jnp.int32))

    # eps follows the reference convention (one N(0,1) row per sorted-batch
    # position); permute it to original order for the in-kernel reparam.
    eps_orig = eps[inv_order]
    eps_pad = jnp.zeros((B_pad, L_pad), jnp.float32).at[:B, :L].set(eps_orig)

    # ---------------- encoder ----------------
    # Time-major gather (row = t*B_pad + b) straight into the kernel layout.
    tok_enc = jnp.zeros((B_pad, S), jnp.int32).at[:B].set(input_sequence)
    x_enc = jnp.take(emb, jnp.transpose(tok_enc).reshape(-1), axis=0)  # bf16
    mean_p, logv_p, z_p = run_encoder(x_enc, length_pad, params, eps_pad,
                                      t_chunk)

    # ---------------- decoder ----------------
    # latent2hidden(z) is computed and then zeroed in the reference
    # (`hidden = hidden - hidden`), so the decoder initial hidden is 0 --
    # exactly what the kernel uses; the projection cannot affect the outputs.
    tok_dec = jnp.zeros((B_pad, S), jnp.int32).at[:B].set(decoder_input)
    tok_dec_tm = jnp.transpose(tok_dec).reshape(-1)
    x_dec = jnp.take(emb, tok_dec_tm, axis=0)                          # bf16
    # mask_to_sentiment: fix up the gathered rows (no per-call rebuild of the
    # full embedding table).
    rep_for_pos = params["neg_rep"] if is_test else params["pos_rep"]
    rep_for_neg = params["pos_rep"] if is_test else params["neg_rep"]
    tok_col = tok_dec_tm[:, None]
    x_dec = jnp.where(tok_col == params["pos_idx"], rep_for_pos, x_dec)
    x_dec = jnp.where(tok_col == params["neg_idx"], rep_for_neg, x_dec)
    # TODO(synk): embedding_dropout / word_dropout are identity here
    # (eval-mode forward).

    # Fused decoder GRU + per-chunk outputs2vocab + log_softmax, written
    # batch-major directly: (B_pad, S, V_pad).
    logp_pad = run_decoder(x_dec, length_pad, params, t_chunk)

    # NOTE: static S is kept (reference pads to max(sorted_lengths); the demo
    # lengths include S so shapes match and there is no device->host sync).
    logp = logp_pad[:B, :, :V]

    # mean / logv / z are returned sorted by length, exactly as the reference.
    mean = mean_p[:B, :L][order]
    logv = logv_p[:B, :L][order]
    z = z_p[:B, :L][order]
    return logp, mean, logv, z


# ----------------------------------------------------------------------------
if __name__ == "__main__":
    vocab_size, E, H, latent_size = 32, 16, 32, 16
    B, S = 4, 16
    T_CHUNK = 8            # bounded unroll inside each chunk; S % T_CHUNK == 0
    pad_idx, sos_idx, eos_idx, unk_idx, pos_idx, neg_idx = 0, 1, 2, 3, 4, 5

    H_pad = _round_up(H, 128)
    V_pad = _round_up(vocab_size, 128)
    L_pad = _round_up(latent_size, 128)

    root = jax.random.PRNGKey(0)
    keys = jax.random.split(root, 12)

    w_mean, b_mean = linear_params(keys[3], H, latent_size)
    w_logv, b_logv = linear_params(keys[4], H, latent_size)
    w_out, b_out = linear_params(keys[7], H, vocab_size)

    params = {
        "vocab_size": vocab_size,
        "latent_size": latent_size,
        "L_pad": L_pad,
        "embedding": jax.random.normal(keys[0], (vocab_size, E),
                                       jnp.float32).astype(jnp.bfloat16),
        "enc_gru": pack_gru_params(keys[1], E, H, H_pad),
        "dec_gru": pack_gru_params(keys[2], E, H, H_pad),
        "pos_idx": pos_idx,
        "neg_idx": neg_idx,
        "pos_rep": jax.random.normal(keys[5], (E,), jnp.float32).astype(jnp.bfloat16),
        "neg_rep": jax.random.normal(keys[6], (E,), jnp.float32).astype(jnp.bfloat16),
        # hidden2mean | hidden2logv packed, tile-padded, bf16 MXU weights.
        "wml": jnp.concatenate([_pad2(w_mean, H_pad, L_pad),
                                _pad2(w_logv, H_pad, L_pad)],
                               axis=1).astype(jnp.bfloat16),
        "bml": jnp.concatenate([_pad2(b_mean, 1, L_pad),
                                _pad2(b_logv, 1, L_pad)], axis=1),
        # outputs2vocab; padded vocab columns get a -1e30 bias so they vanish
        # from the log_softmax normalization.
        "w_out": _pad2(w_out, H_pad, V_pad).astype(jnp.bfloat16),
        "b_out": jnp.full((1, V_pad), -1e30,
                          jnp.float32).at[:, :vocab_size].set(b_out),
    }
    # TODO(synk): latent2hidden weights are omitted on purpose -- the reference
    # computes hidden = latent2hidden(z) and immediately zeroes it, so it can
    # never influence the forward outputs.

    input_sequence = jax.random.randint(keys[8], (B, S), 0, vocab_size,
                                        dtype=jnp.int32)
    decoder_input = jax.random.randint(keys[9], (B, S), 0, vocab_size,
                                       dtype=jnp.int32)
    length = jnp.array([16, 5, 11, 3], dtype=jnp.int32)    # max(length) == S
    eps = jax.random.normal(keys[10], (B, latent_size), jnp.float32)

    logp, mean, logv, z = sentence_vae_forward(params, input_sequence, length,
                                               decoder_input, eps,
                                               is_test=False, t_chunk=T_CHUNK)
    jax.block_until_ready((logp, mean, logv, z))

    assert logp.shape == (B, S, vocab_size)
    assert mean.shape == (B, latent_size) and logv.shape == (B, latent_size)
    assert z.shape == (B, latent_size)
    assert bool(jnp.all(jnp.isfinite(logp)))
    print("KERNEL_OK")
</pallas_src>

<mosaic_0001>
module attributes {stable_mosaic.version = 11 : i64} {
  func.func @gru_encoder_kernel(%arg0: i32, %arg1: memref<64x16xbf16, #tpu.memory_space<vmem>>, %arg2: memref<8x1xi32, #tpu.memory_space<vmem>>, %arg3: memref<16x384xbf16, #tpu.memory_space<vmem>>, %arg4: memref<1x384xf32, #tpu.memory_space<vmem>>, %arg5: memref<128x384xbf16, #tpu.memory_space<vmem>>, %arg6: memref<1x128xf32, #tpu.memory_space<vmem>>, %arg7: memref<128x256xbf16, #tpu.memory_space<vmem>>, %arg8: memref<1x256xf32, #tpu.memory_space<vmem>>, %arg9: memref<8x128xf32, #tpu.memory_space<vmem>>, %arg10: memref<8x128xf32, #tpu.memory_space<vmem>>, %arg11: memref<8x128xf32, #tpu.memory_space<vmem>>, %arg12: memref<8x128xf32, #tpu.memory_space<vmem>>, %arg13: memref<8x128xf32, #tpu.memory_space<vmem>>, %arg14: memref<8x8x384xf32, #tpu.memory_space<vmem>>) attributes {dimension_semantics = [#tpu.dimension_semantics<arbitrary>], iteration_bounds = array<i64: 2>, scalar_prefetch = 0 : i64, scratch_operands = 2 : i64, tpu.core_type = #tpu.core_type<tc>, window_params = [{transform_indices = @transform_0, window_bounds = array<i64: 64, 16>}, {pipeline_mode = #tpu.pipeline_mode<synchronous>, transform_indices = @transform_1, window_bounds = array<i64: 8, 1>}, {pipeline_mode = #tpu.pipeline_mode<synchronous>, transform_indices = @transform_2, window_bounds = array<i64: 16, 384>}, {pipeline_mode = #tpu.pipeline_mode<synchronous>, transform_indices = @transform_3, window_bounds = array<i64: 1, 384>}, {pipeline_mode = #tpu.pipeline_mode<synchronous>, transform_indices = @transform_4, window_bounds = array<i64: 128, 384>}, {pipeline_mode = #tpu.pipeline_mode<synchronous>, transform_indices = @transform_5, window_bounds = array<i64: 1, 128>}, {pipeline_mode = #tpu.pipeline_mode<synchronous>, transform_indices = @transform_6, window_bounds = array<i64: 128, 256>}, {pipeline_mode = #tpu.pipeline_mode<synchronous>, transform_indices = @transform_7, window_bounds = array<i64: 1, 256>}, {pipeline_mode = #tpu.pipeline_mode<synchronous>, transform_indices = @transform_8, window_bounds = array<i64: 8, 128>}, {pipeline_mode = #tpu.pipeline_mode<synchronous>, transform_indices = @transform_9, window_bounds = array<i64: 8, 128>}, {pipeline_mode = #tpu.pipeline_mode<synchronous>, transform_indices = @transform_10, window_bounds = array<i64: 8, 128>}, {pipeline_mode = #tpu.pipeline_mode<synchronous>, transform_indices = @transform_11, window_bounds = array<i64: 8, 128>}]} {
    %c0_i32 = arith.constant 0 : i32
    %0 = arith.cmpi eq, %arg0, %c0_i32 : i32
    %1 = arith.extui %0 : i1 to i32
    %c0_i32_0 = arith.constant 0 : i32
    %2 = arith.cmpi ne, %1, %c0_i32_0 : i32
    scf.if %2 {
      %cst_71 = arith.constant 0.000000e+00 : f32
      %332 = vector.broadcast %cst_71 : f32 to vector<8x128xf32>
      %c0_72 = arith.constant 0 : index
      %c0_73 = arith.constant 0 : index
      %333 = vector.load %arg13[%c0_72, %c0_73] : memref<8x128xf32, #tpu.memory_space<vmem>>, vector<8x128xf32>
      tpu.vector_store %arg13[%c0_72, %c0_73], %332 {strides = array<i32>} : memref<8x128xf32, #tpu.memory_space<vmem>>, vector<8x128xf32>,
    } else {
    }
    %c0 = arith.constant 0 : index
    %c0_1 = arith.constant 0 : index
    %3 = vector.load %arg1[%c0, %c0_1] : memref<64x16xbf16, #tpu.memory_space<vmem>>, vector<64x16xbf16>
    %c0_2 = arith.constant 0 : index
    %c0_3 = arith.constant 0 : index
    %4 = vector.load %arg3[%c0_2, %c0_3] : memref<16x384xbf16, #tpu.memory_space<vmem>>, vector<16x384xbf16>
    %cst = arith.constant dense<0.000000e+00> : vector<64x384xf32>
    %5 = tpu.matmul %3, %4, %cst {dimension_numbers = #tpu.dot_dimension_numbers<[1], [0], [0], [1], [0, 0, 1, 1], [], []>} : vector<64x16xbf16>, vector<16x384xbf16>, vector<64x384xf32> -> vector<64x384xf32>
    %c0_4 = arith.constant 0 : index
    %c0_5 = arith.constant 0 : index
    %6 = vector.load %arg4[%c0_4, %c0_5] : memref<1x384xf32, #tpu.memory_space<vmem>>, vector<1x384xf32>
    %7 = vector.broadcast %6 : vector<1x384xf32> to vector<64x384xf32>
    %8 = arith.addf %5, %7 : vector<64x384xf32>
    %9 = vector.shape_cast %8 : vector<64x384xf32> to vector<8x8x384xf32>
    %c0_6 = arith.constant 0 : index
    %c0_7 = arith.constant 0 : index
    %c0_8 = arith.constant 0 : index
    %10 = vector.load %arg14[%c0_6, %c0_7, %c0_8] : memref<8x8x384xf32, #tpu.memory_space<vmem>>, vector<8x8x384xf32>
    tpu.vector_store %arg14[%c0_6, %c0_7, %c0_8], %9 {strides = array<i32>} : memref<8x8x384xf32, #tpu.memory_space<vmem>>, vector<8x8x384xf32>,
    %c0_9 = arith.constant 0 : index
    %c0_10 = arith.constant 0 : index
    %11 = vector.load %arg2[%c0_9, %c0_10] : memref<8x1xi32, #tpu.memory_space<vmem>>, vector<8x1xi32>
    %c0_11 = arith.constant 0 : index
    %c0_12 = arith.constant 0 : index
    %12 = vector.load %arg5[%c0_11, %c0_12] : memref<128x384xbf16, #tpu.memory_space<vmem>>, vector<128x384xbf16>
    %c0_13 = arith.constant 0 : index
    %c0_14 = arith.constant 0 : index
    %13 = vector.load %arg6[%c0_13, %c0_14] : memref<1x128xf32, #tpu.memory_space<vmem>>, vector<1x128xf32>
    %c8_i32 = arith.constant 8 : i32
    %14 = arith.muli %arg0, %c8_i32 : i32
    %c0_15 = arith.constant 0 : index
    %c0_16 = arith.constant 0 : index
    %15 = vector.load %arg13[%c0_15, %c0_16] : memref<8x128xf32, #tpu.memory_space<vmem>>, vector<8x128xf32>
    %c0_i32_17 = arith.constant 0 : i32
    %16 = arith.index_cast %c0_i32_17 : i32 to index
    %c0_18 = arith.constant 0 : index
    %c0_19 = arith.constant 0 : index
    %17 = vector.load %arg14[%16, %c0_18, %c0_19] : memref<8x8x384xf32, #tpu.memory_space<vmem>>, vector<1x8x384xf32>
    %18 = vector.shape_cast %17 : vector<1x8x384xf32> to vector<8x384xf32>
    %19 = arith.truncf %15 : vector<8x128xf32> to vector<8x128xbf16>
    %cst_20 = arith.constant dense<0.000000e+00> : vector<8x384xf32>
    %20 = tpu.matmul %19, %12, %cst_20 {dimension_numbers = #tpu.dot_dimension_numbers<[1], [0], [0], [1], [0, 0, 1, 1], [], []>} : vector<8x128xbf16>, vector<128x384xbf16>, vector<8x384xf32> -> vector<8x384xf32>
    %21 = vector.extract_strided_slice %18 {offsets = [0, 0], sizes = [8, 128], strides = [1, 1]} : vector<8x384xf32> to vector<8x128xf32>
    %22 = vector.extract_strided_slice %20 {offsets = [0, 0], sizes = [8, 128], strides = [1, 1]} : vector<8x384xf32> to vector<8x128xf32>
    %23 = arith.addf %21, %22 : vector<8x128xf32>
    %24 = arith.negf %23 : vector<8x128xf32>
    %25 = math.exp %24 : vector<8x128xf32>
    %cst_21 = arith.constant 1.000000e+00 : f32
    %26 = vector.broadcast %cst_21 : f32 to vector<8x128xf32>
    %27 = arith.addf %26, %25 : vector<8x128xf32>
    %28 = arith.divf %26, %27 : vector<8x128xf32>
    %29 = vector.extract_strided_slice %18 {offsets = [0, 128], sizes = [8, 128], strides = [1, 1]} : vector<8x384xf32> to vector<8x128xf32>
    %30 = vector.extract_strided_slice %20 {offsets = [0, 128], sizes = [8, 128], strides = [1, 1]} : vector<8x384xf32> to vector<8x128xf32>
    %31 = arith.addf %29, %30 : vector<8x128xf32>
    %32 = arith.negf %31 : vector<8x128xf32>
    %33 = math.exp %32 : vector<8x128xf32>
    %cst_22 = arith.constant 1.000000e+00 : f32
    %34 = vector.broadcast %cst_22 : f32 to vector<8x128xf32>
    %35 = arith.addf %34, %33 : vector<8x128xf32>
    %36 = arith.divf %34, %35 : vector<8x128xf32>
    %37 = vector.extract_strided_slice %18 {offsets = [0, 256], sizes = [8, 128], strides = [1, 1]} : vector<8x384xf32> to vector<8x128xf32>
    %38 = vector.extract_strided_slice %20 {offsets = [0, 256], sizes = [8, 128], strides = [1, 1]} : vector<8x384xf32> to vector<8x128xf32>
    %39 = vector.broadcast %13 : vector<1x128xf32> to vector<8x128xf32>
    %40 = arith.addf %38, %39 : vector<8x128xf32>
    %41 = arith.mulf %28, %40 : vector<8x128xf32>
    %42 = arith.addf %37, %41 : vector<8x128xf32>
    %43 = math.tanh %42 : vector<8x128xf32>
    %cst_23 = arith.constant 1.000000e+00 : f32
    %44 = vector.broadcast %cst_23 : f32 to vector<8x128xf32>
    %45 = arith.subf %44, %36 : vector<8x128xf32>
    %46 = arith.mulf %45, %43 : vector<8x128xf32>
    %47 = arith.mulf %36, %15 : vector<8x128xf32>
    %48 = arith.addf %46, %47 : vector<8x128xf32>
    %49 = arith.addi %14, %c0_i32_17 : i32
    %50 = vector.broadcast %49 : i32 to vector<8x1xi32>
    %51 = arith.cmpi sgt, %11, %50 : vector<8x1xi32>
    %52 = vector.shape_cast %51 : vector<8x1xi1> to vector<8x1xi1>
    %53 = vector.broadcast %52 : vector<8x1xi1> to vector<8x128xi1>
    %54 = arith.select %53, %48, %15 : vector<8x128xi1>, vector<8x128xf32>
    %c1_i32 = arith.constant 1 : i32
    %55 = arith.index_cast %c1_i32 : i32 to index
    %c0_24 = arith.constant 0 : index
    %c0_25 = arith.constant 0 : index
    %56 = vector.load %arg14[%55, %c0_24, %c0_25] : memref<8x8x384xf32, #tpu.memory_space<vmem>>, vector<1x8x384xf32>
    %57 = vector.shape_cast %56 : vector<1x8x384xf32> to vector<8x384xf32>
    %58 = arith.truncf %54 : vector<8x128xf32> to vector<8x128xbf16>
    %cst_26 = arith.constant dense<0.000000e+00> : vector<8x384xf32>
    %59 = tpu.matmul %58, %12, %cst_26 {dimension_numbers = #tpu.dot_dimension_numbers<[1], [0], [0], [1], [0, 0, 1, 1], [], []>} : vector<8x128xbf16>, vector<128x384xbf16>, vector<8x384xf32> -> vector<8x384xf32>
    %60 = vector.extract_strided_slice %57 {offsets = [0, 0], sizes = [8, 128], strides = [1, 1]} : vector<8x384xf32> to vector<8x128xf32>
    %61 = vector.extract_strided_slice %59 {offsets = [0, 0], sizes = [8, 128], strides = [1, 1]} : vector<8x384xf32> to vector<8x128xf32>
    %62 = arith.addf %60, %61 : vector<8x128xf32>
    %63 = arith.negf %62 : vector<8x128xf32>
    %64 = math.exp %63 : vector<8x128xf32>
    %cst_27 = arith.constant 1.000000e+00 : f32
    %65 = vector.broadcast %cst_27 : f32 to vector<8x128xf32>
    %66 = arith.addf %65, %64 : vector<8x128xf32>
    %67 = arith.divf %65, %66 : vector<8x128xf32>
    %68 = vector.extract_strided_slice %57 {offsets = [0, 128], sizes = [8, 128], strides = [1, 1]} : vector<8x384xf32> to vector<8x128xf32>
    %69 = vector.extract_strided_slice %59 {offsets = [0, 128], sizes = [8, 128], strides = [1, 1]} : vector<8x384xf32> to vector<8x128xf32>
    %70 = arith.addf %68, %69 : vector<8x128xf32>
    %71 = arith.negf %70 : vector<8x128xf32>
    %72 = math.exp %71 : vector<8x128xf32>
    %cst_28 = arith.constant 1.000000e+00 : f32
    %73 = vector.broadcast %cst_28 : f32 to vector<8x128xf32>
    %74 = arith.addf %73, %72 : vector<8x128xf32>
    %75 = arith.divf %73, %74 : vector<8x128xf32>
    %76 = vector.extract_strided_slice %57 {offsets = [0, 256], sizes = [8, 128], strides = [1, 1]} : vector<8x384xf32> to vector<8x128xf32>
    %77 = vector.extract_strided_slice %59 {offsets = [0, 256], sizes = [8, 128], strides = [1, 1]} : vector<8x384xf32> to vector<8x128xf32>
    %78 = vector.broadcast %13 : vector<1x128xf32> to vector<8x128xf32>
    %79 = arith.addf %77, %78 : vector<8x128xf32>
    %80 = arith.mulf %67, %79 : vector<8x128xf32>
    %81 = arith.addf %76, %80 : vector<8x128xf32>
    %82 = math.tanh %81 : vector<8x128xf32>
    %cst_29 = arith.constant 1.000000e+00 : f32
    %83 = vector.broadcast %cst_29 : f32 to vector<8x128xf32>
    %84 = arith.subf %83, %75 : vector<8x128xf32>
    %85 = arith.mulf %84, %82 : vector<8x128xf32>
    %86 = arith.mulf %75, %54 : vector<8x128xf32>
    %87 = arith.addf %85, %86 : vector<8x128xf32>
    %88 = arith.addi %14, %c1_i32 : i32
    %89 = vector.broadcast %88 : i32 to vector<8x1xi32>
    %90 = arith.cmpi sgt, %11, %89 : vector<8x1xi32>
    %91 = vector.shape_cast %90 : vector<8x1xi1> to vector<8x1xi1>
    %92 = vector.broadcast %91 : vector<8x1xi1> to vector<8x128xi1>
    %93 = arith.select %92, %87, %54 : vector<8x128xi1>, vector<8x128xf32>
    %c2_i32 = arith.constant 2 : i32
    %94 = arith.index_cast %c2_i32 : i32 to index
    %c0_30 = arith.constant 0 : index
    %c0_31 = arith.constant 0 : index
    %95 = vector.load %arg14[%94, %c0_30, %c0_31] : memref<8x8x384xf32, #tpu.memory_space<vmem>>, vector<1x8x384xf32>
    %96 = vector.shape_cast %95 : vector<1x8x384xf32> to vector<8x384xf32>
    %97 = arith.truncf %93 : vector<8x128xf32> to vector<8x128xbf16>
    %cst_32 = arith.constant dense<0.000000e+00> : vector<8x384xf32>
    %98 = tpu.matmul %97, %12, %cst_32 {dimension_numbers = #tpu.dot_dimension_numbers<[1], [0], [0], [1], [0, 0, 1, 1], [], []>} : vector<8x128xbf16>, vector<128x384xbf16>, vector<8x384xf32> -> vector<8x384xf32>
    %99 = vector.extract_strided_slice %96 {offsets = [0, 0], sizes = [8, 128], strides = [1, 1]} : vector<8x384xf32> to vector<8x128xf32>
    %100 = vector.extract_strided_slice %98 {offsets = [0, 0], sizes = [8, 128], strides = [1, 1]} : vector<8x384xf32> to vector<8x128xf32>
    %101 = arith.addf %99, %100 : vector<8x128xf32>
    %102 = arith.negf %101 : vector<8x128xf32>
    %103 = math.exp %102 : vector<8x128xf32>
    %cst_33 = arith.constant 1.000000e+00 : f32
    %104 = vector.broadcast %cst_33 : f32 to vector<8x128xf32>
    %105 = arith.addf %104, %103 : vector<8x128xf32>
    %106 = arith.divf %104, %105 : vector<8x128xf32>
    %107 = vector.extract_strided_slice %96 {offsets = [0, 128], sizes = [8, 128], strides = [1, 1]} : vector<8x384xf32> to vector<8x128xf32>
    %108 = vector.extract_strided_slice %98 {offsets = [0, 128], sizes = [8, 128], strides = [1, 1]} : vector<8x384xf32> to vector<8x128xf32>
    %109 = arith.addf %107, %108 : vector<8x128xf32>
    %110 = arith.negf %109 : vector<8x128xf32>
    %111 = math.exp %110 : vector<8x128xf32>
    %cst_34 = arith.constant 1.000000e+00 : f32
    %112 = vector.broadcast %cst_34 : f32 to vector<8x128xf32>
    %113 = arith.addf %112, %111 : vector<8x128xf32>
    %114 = arith.divf %112, %113 : vector<8x128xf32>
    %115 = vector.extract_strided_slice %96 {offsets = [0, 256], sizes = [8, 128], strides = [1, 1]} : vector<8x384xf32> to vector<8x128xf32>
    %116 = vector.extract_strided_slice %98 {offsets = [0, 256], sizes = [8, 128], strides = [1, 1]} : vector<8x384xf32> to vector<8x128xf32>
    %117 = vector.broadcast %13 : vector<1x128xf32> to vector<8x128xf32>
    %118 = arith.addf %116, %117 : vector<8x128xf32>
    %119 = arith.mulf %106, %118 : vector<8x128xf32>
    %120 = arith.addf %115, %119 : vector<8x128xf32>
    %121 = math.tanh %120 : vector<8x128xf32>
    %cst_35 = arith.constant 1.000000e+00 : f32
    %122 = vector.broadcast %cst_35 : f32 to vector<8x128xf32>
    %123 = arith.subf %122, %114 : vector<8x128xf32>
    %124 = arith.mulf %123, %121 : vector<8x128xf32>
    %125 = arith.mulf %114, %93 : vector<8x128xf32>
    %126 = arith.addf %124, %125 : vector<8x128xf32>
    %127 = arith.addi %14, %c2_i32 : i32
    %128 = vector.broadcast %127 : i32 to vector<8x1xi32>
    %129 = arith.cmpi sgt, %11, %128 : vector<8x1xi32>
    %130 = vector.shape_cast %129 : vector<8x1xi1> to vector<8x1xi1>
    %131 = vector.broadcast %130 : vector<8x1xi1> to vector<8x128xi1>
    %132 = arith.select %131, %126, %93 : vector<8x128xi1>, vector<8x128xf32>
    %c3_i32 = arith.constant 3 : i32
    %133 = arith.index_cast %c3_i32 : i32 to index
    %c0_36 = arith.constant 0 : index
    %c0_37 = arith.constant 0 : index
    %134 = vector.load %arg14[%133, %c0_36, %c0_37] : memref<8x8x384xf32, #tpu.memory_space<vmem>>, vector<1x8x384xf32>
    %135 = vector.shape_cast %134 : vector<1x8x384xf32> to vector<8x384xf32>
    %136 = arith.truncf %132 : vector<8x128xf32> to vector<8x128xbf16>
    %cst_38 = arith.constant dense<0.000000e+00> : vector<8x384xf32>
    %137 = tpu.matmul %136, %12, %cst_38 {dimension_numbers = #tpu.dot_dimension_numbers<[1], [0], [0], [1], [0, 0, 1, 1], [], []>} : vector<8x128xbf16>, vector<128x384xbf16>, vector<8x384xf32> -> vector<8x384xf32>
    %138 = vector.extract_strided_slice %135 {offsets = [0, 0], sizes = [8, 128], strides = [1, 1]} : vector<8x384xf32> to vector<8x128xf32>
    %139 = vector.extract_strided_slice %137 {offsets = [0, 0], sizes = [8, 128], strides = [1, 1]} : vector<8x384xf32> to vector<8x128xf32>
    %140 = arith.addf %138, %139 : vector<8x128xf32>
    %141 = arith.negf %140 : vector<8x128xf32>
    %142 = math.exp %141 : vector<8x128xf32>
    %cst_39 = arith.constant 1.000000e+00 : f32
    %143 = vector.broadcast %cst_39 : f32 to vector<8x128xf32>
    %144 = arith.addf %143, %142 : vector<8x128xf32>
    %145 = arith.divf %143, %144 : vector<8x128xf32>
    %146 = vector.extract_strided_slice %135 {offsets = [0, 128], sizes = [8, 128], strides = [1, 1]} : vector<8x384xf32> to vector<8x128xf32>
    %147 = vector.extract_strided_slice %137 {offsets = [0, 128], sizes = [8, 128], strides = [1, 1]} : vector<8x384xf32> to vector<8x128xf32>
    %148 = arith.addf %146, %147 : vector<8x128xf32>
    %149 = arith.negf %148 : vector<8x128xf32>
    %150 = math.exp %149 : vector<8x128xf32>
    %cst_40 = arith.constant 1.000000e+00 : f32
    %151 = vector.broadcast %cst_40 : f32 to vector<8x128xf32>
    %152 = arith.addf %151, %150 : vector<8x128xf32>
    %153 = arith.divf %151, %152 : vector<8x128xf32>
    %154 = vector.extract_strided_slice %135 {offsets = [0, 256], sizes = [8, 128], strides = [1, 1]} : vector<8x384xf32> to vector<8x128xf32>
    %155 = vector.extract_strided_slice %137 {offsets = [0, 256], sizes = [8, 128], strides = [1, 1]} : vector<8x384xf32> to vector<8x128xf32>
    %156 = vector.broadcast %13 : vector<1x128xf32> to vector<8x128xf32>
    %157 = arith.addf %155, %156 : vector<8x128xf32>
    %158 = arith.mulf %145, %157 : vector<8x128xf32>
    %159 = arith.addf %154, %158 : vector<8x128xf32>
    %160 = math.tanh %159 : vector<8x128xf32>
    %cst_41 = arith.constant 1.000000e+00 : f32
    %161 = vector.broadcast %cst_41 : f32 to vector<8x128xf32>
    %162 = arith.subf %161, %153 : vector<8x128xf32>
    %163 = arith.mulf %162, %160 : vector<8x128xf32>
    %164 = arith.mulf %153, %132 : vector<8x128xf32>
    %165 = arith.addf %163, %164 : vector<8x128xf32>
    %166 = arith.addi %14, %c3_i32 : i32
    %167 = vector.broadcast %166 : i32 to vector<8x1xi32>
    %168 = arith.cmpi sgt, %11, %167 : vector<8x1xi32>
    %169 = vector.shape_cast %168 : vector<8x1xi1> to vector<8x1xi1>
    %170 = vector.broadcast %169 : vector<8x1xi1> to vector<8x128xi1>
    %171 = arith.select %170, %165, %132 : vector<8x128xi1>, vector<8x128xf32>
    %c4_i32 = arith.constant 4 : i32
    %172 = arith.index_cast %c4_i32 : i32 to index
    %c0_42 = arith.constant 0 : index
    %c0_43 = arith.constant 0 : index
    %173 = vector.load %arg14[%172, %c0_42, %c0_43] : memref<8x8x384xf32, #tpu.memory_space<vmem>>, vector<1x8x384xf32>
    %174 = vector.shape_cast %173 : vector<1x8x384xf32> to vector<8x384xf32>
    %175 = arith.truncf %171 : vector<8x128xf32> to vector<8x128xbf16>
    %cst_44 = arith.constant dense<0.000000e+00> : vector<8x384xf32>
    %176 = tpu.matmul %175, %12, %cst_44 {dimension_numbers = #tpu.dot_dimension_numbers<[1], [0], [0], [1], [0, 0, 1, 1], [], []>} : vector<8x128xbf16>, vector<128x384xbf16>, vector<8x384xf32> -> vector<8x384xf32>
    %177 = vector.extract_strided_slice %174 {offsets = [0, 0], sizes = [8, 128], strides = [1, 1]} : vector<8x384xf32> to vector<8x128xf32>
    %178 = vector.extract_strided_slice %176 {offsets = [0, 0], sizes = [8, 128], strides = [1, 1]} : vector<8x384xf32> to vector<8x128xf32>
    %179 = arith.addf %177, %178 : vector<8x128xf32>
    %180 = arith.negf %179 : vector<8x128xf32>
    %181 = math.exp %180 : vector<8x128xf32>
    %cst_45 = arith.constant 1.000000e+00 : f32
    %182 = vector.broadcast %cst_45 : f32 to vector<8x128xf32>
    %183 = arith.addf %182, %181 : vector<8x128xf32>
    %184 = arith.divf %182, %183 : vector<8x128xf32>
    %185 = vector.extract_strided_slice %174 {offsets = [0, 128], sizes = [8, 128], strides = [1, 1]} : vector<8x384xf32> to vector<8x128xf32>
    %186 = vector.extract_strided_slice %176 {offsets = [0, 128], sizes = [8, 128], strides = [1, 1]} : vector<8x384xf32> to vector<8x128xf32>
    %187 = arith.addf %185, %186 : vector<8x128xf32>
    %188 = arith.negf %187 : vector<8x128xf32>
    %189 = math.exp %188 : vector<8x128xf32>
    %cst_46 = arith.constant 1.000000e+00 : f32
    %190 = vector.broadcast %cst_46 : f32 to vector<8x128xf32>
    %191 = arith.addf %190, %189 : vector<8x128xf32>
    %192 = arith.divf %190, %191 : vector<8x128xf32>
    %193 = vector.extract_strided_slice %174 {offsets = [0, 256], sizes = [8, 128], strides = [1, 1]} : vector<8x384xf32> to vector<8x128xf32>
    %194 = vector.extract_strided_slice %176 {offsets = [0, 256], sizes = [8, 128], strides = [1, 1]} : vector<8x384xf32> to vector<8x128xf32>
    %195 = vector.broadcast %13 : vector<1x128xf32> to vector<8x128xf32>
    %196 = arith.addf %194, %195 : vector<8x128xf32>
    %197 = arith.mulf %184, %196 : vector<8x128xf32>
    %198 = arith.addf %193, %197 : vector<8x128xf32>
    %199 = math.tanh %198 : vector<8x128xf32>
    %cst_47 = arith.constant 1.000000e+00 : f32
    %200 = vector.broadcast %cst_47 : f32 to vector<8x128xf32>
    %201 = arith.subf %200, %192 : vector<8x128xf32>
    %202 = arith.mulf %201, %199 : vector<8x128xf32>
    %203 = arith.mulf %192, %171 : vector<8x128xf32>
    %204 = arith.addf %202, %203 : vector<8x128xf32>
    %205 = arith.addi %14, %c4_i32 : i32
    %206 = vector.broadcast %205 : i32 to vector<8x1xi32>
    %207 = arith.cmpi sgt, %11, %206 : vector<8x1xi32>
    %208 = vector.shape_cast %207 : vector<8x1xi1> to vector<8x1xi1>
    %209 = vector.broadcast %208 : vector<8x1xi1> to vector<8x128xi1>
    %210 = arith.select %209, %204, %171 : vector<8x128xi1>, vector<8x128xf32>
    %c5_i32 = arith.constant 5 : i32
    %211 = arith.index_cast %c5_i32 : i32 to index
    %c0_48 = arith.constant 0 : index
    %c0_49 = arith.constant 0 : index
    %212 = vector.load %arg14[%211, %c0_48, %c0_49] : memref<8x8x384xf32, #tpu.memory_space<vmem>>, vector<1x8x384xf32>
    %213 = vector.shape_cast %212 : vector<1x8x384xf32> to vector<8x384xf32>
    %214 = arith.truncf %210 : vector<8x128xf32> to vector<8x128xbf16>
    %cst_50 = arith.constant dense<0.000000e+00> : vector<8x384xf32>
    %215 = tpu.matmul %214, %12, %cst_50 {dimension_numbers = #tpu.dot_dimension_numbers<[1], [0], [0], [1], [0, 0, 1, 1], [], []>} : vector<8x128xbf16>, vector<128x384xbf16>, vector<8x384xf32> -> vector<8x384xf32>
    %216 = vector.extract_strided_slice %213 {offsets = [0, 0], sizes = [8, 128], strides = [1, 1]} : vector<8x384xf32> to vector<8x128xf32>
    %217 = vector.extract_strided_slice %215 {offsets = [0, 0], sizes = [8, 128], strides = [1, 1]} : vector<8x384xf32> to vector<8x128xf32>
    %218 = arith.addf %216, %217 : vector<8x128xf32>
    %219 = arith.negf %218 : vector<8x128xf32>
    %220 = math.exp %219 : vector<8x128xf32>
    %cst_51 = arith.constant 1.000000e+00 : f32
    %221 = vector.broadcast %cst_51 : f32 to vector<8x128xf32>
    %222 = arith.addf %221, %220 : vector<8x128xf32>
    %223 = arith.divf %221, %222 : vector<8x128xf32>
    %224 = vector.extract_strided_slice %213 {offsets = [0, 128], sizes = [8, 128], strides = [1, 1]} : vector<8x384xf32> to vector<8x128xf32>
    %225 = vector.extract_strided_slice %215 {offsets = [0, 128], sizes = [8, 128], strides = [1, 1]} : vector<8x384xf32> to vector<8x128xf32>
    %226 = arith.addf %224, %225 : vector<8x128xf32>
    %227 = arith.negf %226 : vector<8x128xf32>
    %228 = math.exp %227 : vector<8x128xf32>
    %cst_52 = arith.constant 1.000000e+00 : f32
    %229 = vector.broadcast %cst_52 : f32 to vector<8x128xf32>
    %230 = arith.addf %229, %228 : vector<8x128xf32>
    %231 = arith.divf %229, %230 : vector<8x128xf32>
    %232 = vector.extract_strided_slice %213 {offsets = [0, 256], sizes = [8, 128], strides = [1, 1]} : vector<8x384xf32> to vector<8x128xf32>
    %233 = vector.extract_strided_slice %215 {offsets = [0, 256], sizes = [8, 128], strides = [1, 1]} : vector<8x384xf32> to vector<8x128xf32>
    %234 = vector.broadcast %13 : vector<1x128xf32> to vector<8x128xf32>
    %235 = arith.addf %233, %234 : vector<8x128xf32>
    %236 = arith.mulf %223, %235 : vector<8x128xf32>
    %237 = arith.addf %232, %236 : vector<8x128xf32>
    %238 = math.tanh %237 : vector<8x128xf32>
    %cst_53 = arith.constant 1.000000e+00 : f32
    %239 = vector.broadcast %cst_53 : f32 to vector<8x128xf32>
    %240 = arith.subf %239, %231 : vector<8x128xf32>
    %241 = arith.mulf %240, %238 : vector<8x128xf32>
    %242 = arith.mulf %231, %210 : vector<8x128xf32>
    %243 = arith.addf %241, %242 : vector<8x128xf32>
    %244 = arith.addi %14, %c5_i32 : i32
    %245 = vector.broadcast %244 : i32 to vector<8x1xi32>
    %246 = arith.cmpi sgt, %11, %245 : vector<8x1xi32>
    %247 = vector.shape_cast %246 : vector<8x1xi1> to vector<8x1xi1>
    %248 = vector.broadcast %247 : vector<8x1xi1> to vector<8x128xi1>
    %249 = arith.select %248, %243, %210 : vector<8x128xi1>, vector<8x128xf32>
    %c6_i32 = arith.constant 6 : i32
    %250 = arith.index_cast %c6_i32 : i32 to index
    %c0_54 = arith.constant 0 : index
    %c0_55 = arith.constant 0 : index
    %251 = vector.load %arg14[%250, %c0_54, %c0_55] : memref<8x8x384xf32, #tpu.memory_space<vmem>>, vector<1x8x384xf32>
    %252 = vector.shape_cast %251 : vector<1x8x384xf32> to vector<8x384xf32>
    %253 = arith.truncf %249 : vector<8x128xf32> to vector<8x128xbf16>
    %cst_56 = arith.constant dense<0.000000e+00> : vector<8x384xf32>
    %254 = tpu.matmul %253, %12, %cst_56 {dimension_numbers = #tpu.dot_dimension_numbers<[1], [0], [0], [1], [0, 0, 1, 1], [], []>} : vector<8x128xbf16>, vector<128x384xbf16>, vector<8x384xf32> -> vector<8x384xf32>
    %255 = vector.extract_strided_slice %252 {offsets = [0, 0], sizes = [8, 128], strides = [1, 1]} : vector<8x384xf32> to vector<8x128xf32>
    %256 = vector.extract_strided_slice %254 {offsets = [0, 0], sizes = [8, 128], strides = [1, 1]} : vector<8x384xf32> to vector<8x128xf32>
    %257 = arith.addf %255, %256 : vector<8x128xf32>
    %258 = arith.negf %257 : vector<8x128xf32>
    %259 = math.exp %258 : vector<8x128xf32>
    %cst_57 = arith.constant 1.000000e+00 : f32
    %260 = vector.broadcast %cst_57 : f32 to vector<8x128xf32>
    %261 = arith.addf %260, %259 : vector<8x128xf32>
    %262 = arith.divf %260, %261 : vector<8x128xf32>
    %263 = vector.extract_strided_slice %252 {offsets = [0, 128], sizes = [8, 128], strides = [1, 1]} : vector<8x384xf32> to vector<8x128xf32>
    %264 = vector.extract_strided_slice %254 {offsets = [0, 128], sizes = [8, 128], strides = [1, 1]} : vector<8x384xf32> to vector<8x128xf32>
    %265 = arith.addf %263, %264 : vector<8x128xf32>
    %266 = arith.negf %265 : vector<8x128xf32>
    %267 = math.exp %266 : vector<8x128xf32>
    %cst_58 = arith.constant 1.000000e+00 : f32
    %268 = vector.broadcast %cst_58 : f32 to vector<8x128xf32>
    %269 = arith.addf %268, %267 : vector<8x128xf32>
    %270 = arith.divf %268, %269 : vector<8x128xf32>
    %271 = vector.extract_strided_slice %252 {offsets = [0, 256], sizes = [8, 128], strides = [1, 1]} : vector<8x384xf32> to vector<8x128xf32>
    %272 = vector.extract_strided_slice %254 {offsets = [0, 256], sizes = [8, 128], strides = [1, 1]} : vector<8x384xf32> to vector<8x128xf32>
    %273 = vector.broadcast %13 : vector<1x128xf32> to vector<8x128xf32>
    %274 = arith.addf %272, %273 : vector<8x128xf32>
    %275 = arith.mulf %262, %274 : vector<8x128xf32>
    %276 = arith.addf %271, %275 : vector<8x128xf32>
    %277 = math.tanh %276 : vector<8x128xf32>
    %cst_59 = arith.constant 1.000000e+00 : f32
    %278 = vector.broadcast %cst_59 : f32 to vector<8x128xf32>
    %279 = arith.subf %278, %270 : vector<8x128xf32>
    %280 = arith.mulf %279, %277 : vector<8x128xf32>
    %281 = arith.mulf %270, %249 : vector<8x128xf32>
    %282 = arith.addf %280, %281 : vector<8x128xf32>
    %283 = arith.addi %14, %c6_i32 : i32
    %284 = vector.broadcast %283 : i32 to vector<8x1xi32>
    %285 = arith.cmpi sgt, %11, %284 : vector<8x1xi32>
    %286 = vector.shape_cast %285 : vector<8x1xi1> to vector<8x1xi1>
    %287 = vector.broadcast %286 : vector<8x1xi1> to vector<8x128xi1>
    %288 = arith.select %287, %282, %249 : vector<8x128xi1>, vector<8x128xf32>
    %c7_i32 = arith.constant 7 : i32
    %289 = arith.index_cast %c7_i32 : i32 to index
    %c0_60 = arith.constant 0 : index
    %c0_61 = arith.constant 0 : index
    %290 = vector.load %arg14[%289, %c0_60, %c0_61] : memref<8x8x384xf32, #tpu.memory_space<vmem>>, vector<1x8x384xf32>
    %291 = vector.shape_cast %290 : vector<1x8x384xf32> to vector<8x384xf32>
    %292 = arith.truncf %288 : vector<8x128xf32> to vector<8x128xbf16>
    %cst_62 = arith.constant dense<0.000000e+00> : vector<8x384xf32>
    %293 = tpu.matmul %292, %12, %cst_62 {dimension_numbers = #tpu.dot_dimension_numbers<[1], [0], [0], [1], [0, 0, 1, 1], [], []>} : vector<8x128xbf16>, vector<128x384xbf16>, vector<8x384xf32> -> vector<8x384xf32>
    %294 = vector.extract_strided_slice %291 {offsets = [0, 0], sizes = [8, 128], strides = [1, 1]} : vector<8x384xf32> to vector<8x128xf32>
    %295 = vector.extract_strided_slice %293 {offsets = [0, 0], sizes = [8, 128], strides = [1, 1]} : vector<8x384xf32> to vector<8x128xf32>
    %296 = arith.addf %294, %295 : vector<8x128xf32>
    %297 = arith.negf %296 : vector<8x128xf32>
    %298 = math.exp %297 : vector<8x128xf32>
    %cst_63 = arith.constant 1.000000e+00 : f32
    %299 = vector.broadcast %cst_63 : f32 to vector<8x128xf32>
    %300 = arith.addf %299, %298 : vector<8x128xf32>
    %301 = arith.divf %299, %300 : vector<8x128xf32>
    %302 = vector.extract_strided_slice %291 {offsets = [0, 128], sizes = [8, 128], strides = [1, 1]} : vector<8x384xf32> to vector<8x128xf32>
    %303 = vector.extract_strided_slice %293 {offsets = [0, 128], sizes = [8, 128], strides = [1, 1]} : vector<8x384xf32> to vector<8x128xf32>
    %304 = arith.addf %302, %303 : vector<8x128xf32>
    %305 = arith.negf %304 : vector<8x128xf32>
    %306 = math.exp %305 : vector<8x128xf32>
    %cst_64 = arith.constant 1.000000e+00 : f32
    %307 = vector.broadcast %cst_64 : f32 to vector<8x128xf32>
    %308 = arith.addf %307, %306 : vector<8x128xf32>
    %309 = arith.divf %307, %308 : vector<8x128xf32>
    %310 = vector.extract_strided_slice %291 {offsets = [0, 256], sizes = [8, 128], strides = [1, 1]} : vector<8x384xf32> to vector<8x128xf32>
    %311 = vector.extract_strided_slice %293 {offsets = [0, 256], sizes = [8, 128], strides = [1, 1]} : vector<8x384xf32> to vector<8x128xf32>
    %312 = vector.broadcast %13 : vector<1x128xf32> to vector<8x128xf32>
    %313 = arith.addf %311, %312 : vector<8x128xf32>
    %314 = arith.mulf %301, %313 : vector<8x128xf32>
    %315 = arith.addf %310, %314 : vector<8x128xf32>
    %316 = math.tanh %315 : vector<8x128xf32>
    %cst_65 = arith.constant 1.000000e+00 : f32
    %317 = vector.broadcast %cst_65 : f32 to vector<8x128xf32>
    %318 = arith.subf %317, %309 : vector<8x128xf32>
    %319 = arith.mulf %318, %316 : vector<8x128xf32>
    %320 = arith.mulf %309, %288 : vector<8x128xf32>
    %321 = arith.addf %319, %320 : vector<8x128xf32>
    %322 = arith.addi %14, %c7_i32 : i32
    %323 = vector.broadcast %322 : i32 to vector<8x1xi32>
    %324 = arith.cmpi sgt, %11, %323 : vector<8x1xi32>
    %325 = vector.shape_cast %324 : vector<8x1xi1> to vector<8x1xi1>
    %326 = vector.broadcast %325 : vector<8x1xi1> to vector<8x128xi1>
    %327 = arith.select %326, %321, %288 : vector<8x128xi1>, vector<8x128xf32>
    %c8_i32_66 = arith.constant 8 : i32
    %c0_67 = arith.constant 0 : index
    %c0_68 = arith.constant 0 : index
    %328 = vector.load %arg13[%c0_67, %c0_68] : memref<8x128xf32, #tpu.memory_space<vmem>>, vector<8x128xf32>
    tpu.vector_store %arg13[%c0_67, %c0_68], %327 {strides = array<i32>} : memref<8x128xf32, #tpu.memory_space<vmem>>, vector<8x128xf32>,
    %c1_i32_69 = arith.constant 1 : i32
    %329 = arith.cmpi eq, %arg0, %c1_i32_69 : i32
    %330 = arith.extui %329 : i1 to i32
    %c0_i32_70 = arith.constant 0 : i32
    %331 = arith.cmpi ne, %330, %c0_i32_70 : i32
    scf.if %331 {
      %332 = arith.truncf %327 : vector<8x128xf32> to vector<8x128xbf16>
      %c0_71 = arith.constant 0 : index
      %c0_72 = arith.constant 0 : index
      %333 = vector.load %arg7[%c0_71, %c0_72] : memref<128x256xbf16, #tpu.memory_space<vmem>>, vector<128x256xbf16>
      %cst_73 = arith.constant dense<0.000000e+00> : vector<8x256xf32>
      %334 = tpu.matmul %332, %333, %cst_73 {dimension_numbers = #tpu.dot_dimension_numbers<[1], [0], [0], [1], [0, 0, 1, 1], [], []>} : vector<8x128xbf16>, vector<128x256xbf16>, vector<8x256xf32> -> vector<8x256xf32>
      %c0_74 = arith.constant 0 : index
      %c0_75 = arith.constant 0 : index
      %335 = vector.load %arg8[%c0_74, %c0_75] : memref<1x256xf32, #tpu.memory_space<vmem>>, vector<1x256xf32>
      %336 = vector.broadcast %335 : vector<1x256xf32> to vector<8x256xf32>
      %337 = arith.addf %334, %336 : vector<8x256xf32>
      %338 = vector.extract_strided_slice %337 {offsets = [0, 0], sizes = [8, 128], strides = [1, 1]} : vector<8x256xf32> to vector<8x128xf32>
      %339 = vector.extract_strided_slice %337 {offsets = [0, 128], sizes = [8, 128], strides = [1, 1]} : vector<8x256xf32> to vector<8x128xf32>
      %c0_76 = arith.constant 0 : index
      %c0_77 = arith.constant 0 : index
      %340 = vector.load %arg10[%c0_76, %c0_77] : memref<8x128xf32, #tpu.memory_space<vmem>>, vector<8x128xf32>
      tpu.vector_store %arg10[%c0_76, %c0_77], %338 {strides = array<i32>} : memref<8x128xf32, #tpu.memory_space<vmem>>, vector<8x128xf32>,
      %c0_78 = arith.constant 0 : index
      %c0_79 = arith.constant 0 : index
      %341 = vector.load %arg11[%c0_78, %c0_79] : memref<8x128xf32, #tpu.memory_space<vmem>>, vector<8x128xf32>
      tpu.vector_store %arg11[%c0_78, %c0_79], %339 {strides = array<i32>} : memref<8x128xf32, #tpu.memory_space<vmem>>, vector<8x128xf32>,
      %c0_80 = arith.constant 0 : index
      %c0_81 = arith.constant 0 : index
      %342 = vector.load %arg9[%c0_80, %c0_81] : memref<8x128xf32, #tpu.memory_space<vmem>>, vector<8x128xf32>
      %cst_82 = arith.constant 5.000000e-01 : f32
      %343 = vector.broadcast %cst_82 : f32 to vector<8x128xf32>
      %344 = arith.mulf %343, %339 : vector<8x128xf32>
      %345 = math.exp %344 : vector<8x128xf32>
      %346 = arith.mulf %342, %345 : vector<8x128xf32>
      %347 = arith.addf %346, %338 : vector<8x128xf32>
      %c0_83 = arith.constant 0 : index
      %c0_84 = arith.constant 0 : index
      %348 = vector.load %arg12[%c0_83, %c0_84] : memref<8x128xf32, #tpu.memory_space<vmem>>, vector<8x128xf32>
      tpu.vector_store %arg12[%c0_83, %c0_84], %347 {strides = array<i32>} : memref<8x128xf32, #tpu.memory_space<vmem>>, vector<8x128xf32>,
    } else {
    }
    return
  }
  func.func @transform_0(%arg0: i32) -> (i32, i32) {
    %c0_i32 = arith.constant 0 : i32
    %c0_i32_0 = arith.constant 0 : i32
    return %arg0, %c0_i32 : i32, i32
  }
  func.func @transform_1(%arg0: i32) -> (i32, i32) {
    %c0_i32 = arith.constant 0 : i32
    %c0_i32_0 = arith.constant 0 : i32
    %c0_i32_1 = arith.constant 0 : i32
    return %c0_i32, %c0_i32_0 : i32, i32
  }
  func.func @transform_2(%arg0: i32) -> (i32, i32) {
    %c0_i32 = arith.constant 0 : i32
    %c0_i32_0 = arith.constant 0 : i32
    %c0_i32_1 = arith.constant 0 : i32
    return %c0_i32, %c0_i32_0 : i32, i32
  }
  func.func @transform_3(%arg0: i32) -> (i32, i32) {
    %c0_i32 = arith.constant 0 : i32
    %c0_i32_0 = arith.constant 0 : i32
    %c0_i32_1 = arith.constant 0 : i32
    return %c0_i32, %c0_i32_0 : i32, i32
  }
  func.func @transform_4(%arg0: i32) -> (i32, i32) {
    %c0_i32 = arith.constant 0 : i32
    %c0_i32_0 = arith.constant 0 : i32
    %c0_i32_1 = arith.constant 0 : i32
    return %c0_i32, %c0_i32_0 : i32, i32
  }
  func.func @transform_5(%arg0: i32) -> (i32, i32) {
    %c0_i32 = arith.constant 0 : i32
    %c0_i32_0 = arith.constant 0 : i32
    %c0_i32_1 = arith.constant 0 : i32
    return %c0_i32, %c0_i32_0 : i32, i32
  }
  func.func @transform_6(%arg0: i32) -> (i32, i32) {
    %c0_i32 = arith.constant 0 : i32
    %c0_i32_0 = arith.constant 0 : i32
    %c0_i32_1 = arith.constant 0 : i32
    return %c0_i32, %c0_i32_0 : i32, i32
  }
  func.func @transform_7(%arg0: i32) -> (i32, i32) {
    %c0_i32 = arith.constant 0 : i32
    %c0_i32_0 = arith.constant 0 : i32
    %c0_i32_1 = arith.constant 0 : i32
    return %c0_i32, %c0_i32_0 : i32, i32
  }
  func.func @transform_8(%arg0: i32) -> (i32, i32) {
    %c0_i32 = arith.constant 0 : i32
    %c0_i32_0 = arith.constant 0 : i32
    %c0_i32_1 = arith.constant 0 : i32
    return %c0_i32, %c0_i32_0 : i32, i32
  }
  func.func @transform_9(%arg0: i32) -> (i32, i32) {
    %c0_i32 = arith.constant 0 : i32
    %c0_i32_0 = arith.constant 0 : i32
    %c0_i32_1 = arith.constant 0 : i32
    return %c0_i32, %c0_i32_0 : i32, i32
  }
  func.func @transform_10(%arg0: i32) -> (i32, i32) {
    %c0_i32 = arith.constant 0 : i32
    %c0_i32_0 = arith.constant 0 : i32
    %c0_i32_1 = arith.constant 0 : i32
    return %c0_i32, %c0_i32_0 : i32, i32
  }
  func.func @transform_11(%arg0: i32) -> (i32, i32) {
    %c0_i32 = arith.constant 0 : i32
    %c0_i32_0 = arith.constant 0 : i32
    %c0_i32_1 = arith.constant 0 : i32
    return %c0_i32, %c0_i32_0 : i32, i32
  }
}

</mosaic_0001>

<llo_original>
// kernel: tpu_custom_call.1
$region0: #{tpu_custom_call.1}
  #allocation0 [shape = 'u32[]', space=smem, size = 0x4, offset = 0x4, fixed_abs, tag = 'smem constant byte address 0x4 - core index']
  #allocation1 [shape = 'u32[144,128]{1,0:T(1,128)}', space=vmem, size = 0x12000, scoped, tag = 'internal scratch']
  #allocation2 [shape = 'f32[8,128]{1,0:T(8,128)}', space=vmem, size = 0x1000, scoped, tag = 'scratch operand']
  #allocation3 [shape = 'f32[8,8,384]{2,1,0:T(8,128)}', space=vmem, size = 0x18000, scoped, tag = 'scratch operand']
  %s0 = inlined_call_operand.hbm [shape: bf16[128,16], index: 0, kind: input, shape index: {}]
  %s1 = inlined_call_operand.hbm [shape: s32[8,1], index: 1, kind: input, shape index: {}]
  %s2 = inlined_call_operand.hbm [shape: bf16[16,384], index: 2, kind: input, shape index: {}]
  %s3 = inlined_call_operand.hbm [shape: f32[1,384], index: 3, kind: input, shape index: {}]
  %s4 = inlined_call_operand.hbm [shape: bf16[128,384], index: 4, kind: input, shape index: {}]
  %s5 = inlined_call_operand.hbm [shape: f32[1,128], index: 5, kind: input, shape index: {}]
  %s6 = inlined_call_operand.hbm [shape: bf16[128,256], index: 6, kind: input, shape index: {}]
  %s7 = inlined_call_operand.hbm [shape: f32[1,256], index: 7, kind: input, shape index: {}]
  %s8 = inlined_call_operand.hbm [shape: f32[8,128], index: 8, kind: input, shape index: {}]
  %s9 = inlined_call_operand.hbm [shape: f32[8,128], index: 9, kind: output, shape index: {0}]
  %s10 = inlined_call_operand.hbm [shape: f32[8,128], index: 10, kind: output, shape index: {1}]
  %s11 = inlined_call_operand.hbm [shape: f32[8,128], index: 11, kind: output, shape index: {2}]
  %12 = xla_tuple %s9, %s10, %s11
  %s13 = sld [smem:[#allocation0]]
  $region129: #{tpu_custom_call.1} parent=0
    _
  %s15 = ssub.s32 1, %s13
  %s16 = scalar_select 0, %s15, %s13
  $region1: #{tpu_custom_call.1} parent=0
    #allocation4 [shape = 'u8[32768]{0}', space=vmem, size = 0x8000, scoped, tag = 'input window, operand 0']
    #allocation5 [shape = 's32[2]{0}', space=sflag, size = 0x8, scoped, tag = 'scoped memory for tpu_custom_call.1']
    #allocation6 [shape = 's32[2]{0}', space=sflag, size = 0x8, scoped, tag = 'scoped memory for tpu_custom_call.1']
    #allocation7 [shape = 'u8[4096]{0}', space=vmem, size = 0x1000, scoped, tag = 'input window, operand 1, single buffered']
    #allocation8 [shape = 's32[1]{0}', space=sflag, size = 0x4, scoped, tag = 'scoped memory for tpu_custom_call.1']
    #allocation9 [shape = 'u8[12288]{0}', space=vmem, size = 0x3000, scoped, tag = 'input window, operand 2, single buffered']
    #allocation10 [shape = 'u8[1536]{0}', space=vmem, size = 0x800, scoped, tag = 'input window, operand 3, single buffered']
    #allocation11 [shape = 's32[1]{0}', space=sflag, size = 0x4, scoped, tag = 'scoped memory for tpu_custom_call.1']
    #allocation12 [shape = 'u8[98304]{0}', space=vmem, size = 0x18000, scoped, tag = 'input window, operand 4, single buffered']
    #allocation13 [shape = 'u8[512]{0}', space=vmem, size = 0x400, scoped, tag = 'input window, operand 5, single buffered']
    #allocation14 [shape = 's32[1]{0}', space=sflag, size = 0x4, scoped, tag = 'scoped memory for tpu_custom_call.1']
    #allocation15 [shape = 'u8[65536]{0}', space=vmem, size = 0x10000, scoped, tag = 'input window, operand 6, single buffered']
    #allocation16 [shape = 'u8[1024]{0}', space=vmem, size = 0x400, scoped, tag = 'input window, operand 7, single buffered']
    #allocation17 [shape = 's32[1]{0}', space=sflag, size = 0x4, scoped, tag = 'scoped memory for tpu_custom_call.1']
    #allocation18 [shape = 'u8[4096]{0}', space=vmem, size = 0x1000, scoped, tag = 'input window, operand 8, single buffered']
    #allocation19 [shape = 'u8[4096]{0}', space=vmem, size = 0x1000, scoped, tag = 'output window, operand 0, single buffered']
    #allocation20 [shape = 'u8[4096]{0}', space=vmem, size = 0x1000, scoped, tag = 'output window, operand 1, single buffered']
    #allocation21 [shape = 's32[1]{0}', space=sflag, size = 0x4, scoped, tag = 'scoped memory for tpu_custom_call.1']
    #allocation22 [shape = 'u8[4096]{0}', space=vmem, size = 0x1000, scoped, tag = 'output window, operand 2, single buffered']
    %17 = vsyncpa [#allocation5], 0
    %s18 = scalar_lea.sflag [#allocation5], 1
    %19 = vsyncpa %s18, 0
    %20 = vsyncpa [#allocation8], 0
    %21 = vsyncpa [#allocation11], 0
    %22 = vsyncpa [#allocation14], 0
    %23 = vsyncpa [#allocation17], 0
    %24 = vsyncpa [#allocation6], 0
    %25 = vsyncpa [#allocation21], 0
    loop: start=0, step=1, limit=4
    $region2: #{tpu_custom_call.1} parent=1 // loop_pre_header
      _
    $region3: #{tpu_custom_call.1} parent=1 // loop_header
      %s27 = sphi 0, %s31
      %p28 = scmp.ge.s32.totalorder %s27, 4
      %s37 = sphi 0, %s39
      %s40 = sphi 0, %s37
      %s41 = sphi 0, %s40
      %s57 = sphi 0, %s41
      %s61 = sphi 0, %s61
      %s63 = sphi 0, %s61
      %s64 = sphi 0, %s63
      %s78 = sphi 0, %s64
      %s82 = sphi 0, %s82
      %s84 = sphi 0, %s82
      %s85 = sphi 0, %s84
      %s99 = sphi 0, %s85
      %s103 = sphi 0, %s103
      %s105 = sphi 0, %s103
      %s106 = sphi 0, %s105
      %s120 = sphi 0, %s106
      %s124 = sphi 0, %s124
      %s126 = sphi 0, %s124
      %s127 = sphi 0, %s126
      %s141 = sphi 0, %s127
      %s145 = sphi 0, %s145
      %s147 = sphi 0, %s145
      %s148 = sphi 0, %s147
      %s162 = sphi 0, %s148
      %s166 = sphi 0, %s166
      %s168 = sphi 0, %s166
      %s169 = sphi 0, %s168
      %s183 = sphi 0, %s169
      %s187 = sphi 0, %s187
      %s189 = sphi 0, %s187
      %s190 = sphi 0, %s189
      %s204 = sphi 0, %s190
      %s208 = sphi 0, %s208
      %s210 = sphi 0, %s208
      %s211 = sphi 0, %s210
      %s225 = sphi 0, %s211
      %s229 = sphi 0, %s229
      %s231 = sphi 0, %s229
      %s232 = sphi 0, %s231
      %s246 = sphi 0, %s232
      %s250 = sphi 0, %s250
      %s252 = sphi 0, %s250
      %s253 = sphi 0, %s252
      %s267 = sphi 0, %s253
      %s271 = sphi 0, %s271
      %s273 = sphi 0, %s271
      %s274 = sphi 0, %s273
      %s288 = sphi 0, %s274
    $region4: #{tpu_custom_call.1} parent=1 // loop_header_branch
      %30 = sbr.rel (%p28) target = $region8
    $region5: #{tpu_custom_call.1} parent=1 // loop_body
      %s32 = ssub.s32 %s27, 1
      %s33 = ssub.s32 %s27, 2
      %s34 = sadd.s32 %s27, 1
      %s35 = ssub.s32 %s27, %s34
      %p36 = scmp.eq.s32.totalorder %s35, 0
      %s38 = sadd.s32 %s37, 1
      %s39 = scalar_select %p36, %s37, %s38
      %p42 = pneg %p36
      %p43 = scmp.eq.s32.totalorder %s27, 1
      %p44 = por %p42, %p43
      %p45 = scmp.ne.s32.totalorder %s37, %s40
      %p46 = scmp.eq.s32.totalorder %s27, 0
      %p47 = por %p45, %p46
      %p48 = scmp.ne.s32.totalorder %s37, %s40
      %p49 = scmp.eq.s32.totalorder %s32, 1
      %p50 = por %p48, %p49
      %p51 = scmp.ne.s32.totalorder %s40, %s41
      %p52 = scmp.eq.s32.totalorder %s32, 0
      %p53 = por %p51, %p52
      %p54 = scmp.ne.s32.totalorder %s40, %s41
      %p55 = scmp.eq.s32.totalorder %s33, 1
      %p56 = por %p54, %p55
      %p58 = scmp.ne.s32.totalorder %s41, %s57
      %p59 = scmp.eq.s32.totalorder %s33, 0
      %p60 = por %p58, %p59
      %s62 = sadd.s32 %s61, 1
      %p65 = scmp.eq.s32.totalorder %s27, 1
      %p66 = scmp.ne.s32.totalorder %s61, %s63
      %p67 = scmp.eq.s32.totalorder %s27, 0
      %p68 = por %p66, %p67
      %p69 = scmp.ne.s32.totalorder %s61, %s63
      %p70 = scmp.eq.s32.totalorder %s32, 1
      %p71 = por %p69, %p70
      %p72 = scmp.ne.s32.totalorder %s63, %s64
      %p73 = scmp.eq.s32.totalorder %s32, 0
      %p74 = por %p72, %p73
      %p75 = scmp.ne.s32.totalorder %s63, %s64
      %p76 = scmp.eq.s32.totalorder %s33, 1
      %p77 = por %p75, %p76
      %p79 = scmp.ne.s32.totalorder %s64, %s78
      %p80 = scmp.eq.s32.totalorder %s33, 0
      %p81 = por %p79, %p80
      %s83 = sadd.s32 %s82, 1
      %p86 = scmp.eq.s32.totalorder %s27, 1
      %p87 = scmp.ne.s32.totalorder %s82, %s84
      %p88 = scmp.eq.s32.totalorder %s27, 0
      %p89 = por %p87, %p88
      %p90 = scmp.ne.s32.totalorder %s82, %s84
      %p91 = scmp.eq.s32.totalorder %s32, 1
      %p92 = por %p90, %p91
      %p93 = scmp.ne.s32.totalorder %s84, %s85
      %p94 = scmp.eq.s32.totalorder %s32, 0
      %p95 = por %p93, %p94
      %p96 = scmp.ne.s32.totalorder %s84, %s85
      %p97 = scmp.eq.s32.totalorder %s33, 1
      %p98 = por %p96, %p97
      %p100 = scmp.ne.s32.totalorder %s85, %s99
      %p101 = scmp.eq.s32.totalorder %s33, 0
      %p102 = por %p100, %p101
      %s104 = sadd.s32 %s103, 1
      %p107 = scmp.eq.s32.totalorder %s27, 1
      %p108 = scmp.ne.s32.totalorder %s103, %s105
      %p109 = scmp.eq.s32.totalorder %s27, 0
      %p110 = por %p108, %p109
      %p111 = scmp.ne.s32.totalorder %s103, %s105
      %p112 = scmp.eq.s32.totalorder %s32, 1
      %p113 = por %p111, %p112
      %p114 = scmp.ne.s32.totalorder %s105, %s106
      %p115 = scmp.eq.s32.totalorder %s32, 0
      %p116 = por %p114, %p115
      %p117 = scmp.ne.s32.totalorder %s105, %s106
      %p118 = scmp.eq.s32.totalorder %s33, 1
      %p119 = por %p117, %p118
      %p121 = scmp.ne.s32.totalorder %s106, %s120
      %p122 = scmp.eq.s32.totalorder %s33, 0
      %p123 = por %p121, %p122
      %s125 = sadd.s32 %s124, 1
      %p128 = scmp.eq.s32.totalorder %s27, 1
      %p129 = scmp.ne.s32.totalorder %s124, %s126
      %p130 = scmp.eq.s32.totalorder %s27, 0
      %p131 = por %p129, %p130
      %p132 = scmp.ne.s32.totalorder %s124, %s126
      %p133 = scmp.eq.s32.totalorder %s32, 1
      %p134 = por %p132, %p133
      %p135 = scmp.ne.s32.totalorder %s126, %s127
      %p136 = scmp.eq.s32.totalorder %s32, 0
      %p137 = por %p135, %p136
      %p138 = scmp.ne.s32.totalorder %s126, %s127
      %p139 = scmp.eq.s32.totalorder %s33, 1
      %p140 = por %p138, %p139
      %p142 = scmp.ne.s32.totalorder %s127, %s141
      %p143 = scmp.eq.s32.totalorder %s33, 0
      %p144 = por %p142, %p143
      %s146 = sadd.s32 %s145, 1
      %p149 = scmp.eq.s32.totalorder %s27, 1
      %p150 = scmp.ne.s32.totalorder %s145, %s147
      %p151 = scmp.eq.s32.totalorder %s27, 0
      %p152 = por %p150, %p151
      %p153 = scmp.ne.s32.totalorder %s145, %s147
      %p154 = scmp.eq.s32.totalorder %s32, 1
      %p155 = por %p153, %p154
      %p156 = scmp.ne.s32.totalorder %s147, %s148
      %p157 = scmp.eq.s32.totalorder %s32, 0
      %p158 = por %p156, %p157
      %p159 = scmp.ne.s32.totalorder %s147, %s148
      %p160 = scmp.eq.s32.totalorder %s33, 1
      %p161 = por %p159, %p160
      %p163 = scmp.ne.s32.totalorder %s148, %s162
      %p164 = scmp.eq.s32.totalorder %s33, 0
      %p165 = por %p163, %p164
      %s167 = sadd.s32 %s166, 1
      %p170 = scmp.eq.s32.totalorder %s27, 1
      %p171 = scmp.ne.s32.totalorder %s166, %s168
      %p172 = scmp.eq.s32.totalorder %s27, 0
      %p173 = por %p171, %p172
      %p174 = scmp.ne.s32.totalorder %s166, %s168
      %p175 = scmp.eq.s32.totalorder %s32, 1
      %p176 = por %p174, %p175
      %p177 = scmp.ne.s32.totalorder %s168, %s169
      %p178 = scmp.eq.s32.totalorder %s32, 0
      %p179 = por %p177, %p178
      %p180 = scmp.ne.s32.totalorder %s168, %s169
      %p181 = scmp.eq.s32.totalorder %s33, 1
      %p182 = por %p180, %p181
      %p184 = scmp.ne.s32.totalorder %s169, %s183
      %p185 = scmp.eq.s32.totalorder %s33, 0
      %p186 = por %p184, %p185
      %s188 = sadd.s32 %s187, 1
      %p191 = scmp.eq.s32.totalorder %s27, 1
      %p192 = scmp.ne.s32.totalorder %s187, %s189
      %p193 = scmp.eq.s32.totalorder %s27, 0
      %p194 = por %p192, %p193
      %p195 = scmp.ne.s32.totalorder %s187, %s189
      %p196 = scmp.eq.s32.totalorder %s32, 1
      %p197 = por %p195, %p196
      %p198 = scmp.ne.s32.totalorder %s189, %s190
      %p199 = scmp.eq.s32.totalorder %s32, 0
      %p200 = por %p198, %p199
      %p201 = scmp.ne.s32.totalorder %s189, %s190
      %p202 = scmp.eq.s32.totalorder %s33, 1
      %p203 = por %p201, %p202
      %p205 = scmp.ne.s32.totalorder %s190, %s204
      %p206 = scmp.eq.s32.totalorder %s33, 0
      %p207 = por %p205, %p206
      %s209 = sadd.s32 %s208, 1
      %p212 = scmp.eq.s32.totalorder %s27, 1
      %p213 = scmp.ne.s32.totalorder %s208, %s210
      %p214 = scmp.eq.s32.totalorder %s27, 0
      %p215 = por %p213, %p214
      %p216 = scmp.ne.s32.totalorder %s208, %s210
      %p217 = scmp.eq.s32.totalorder %s32, 1
      %p218 = por %p216, %p217
      %p219 = scmp.ne.s32.totalorder %s210, %s211
      %p220 = scmp.eq.s32.totalorder %s32, 0
      %p221 = por %p219, %p220
      %p222 = scmp.ne.s32.totalorder %s210, %s211
      %p223 = scmp.eq.s32.totalorder %s33, 1
      %p224 = por %p222, %p223
      %p226 = scmp.ne.s32.totalorder %s211, %s225
      %p227 = scmp.eq.s32.totalorder %s33, 0
      %p228 = por %p226, %p227
      %s230 = sadd.s32 %s229, 1
      %p233 = scmp.eq.s32.totalorder %s27, 1
      %p234 = scmp.ne.s32.totalorder %s229, %s231
      %p235 = scmp.eq.s32.totalorder %s27, 0
      %p236 = por %p234, %p235
      %p237 = scmp.ne.s32.totalorder %s229, %s231
      %p238 = scmp.eq.s32.totalorder %s32, 1
      %p239 = por %p237, %p238
      %p240 = scmp.ne.s32.totalorder %s231, %s232
      %p241 = scmp.eq.s32.totalorder %s32, 0
      %p242 = por %p240, %p241
      %p243 = scmp.ne.s32.totalorder %s231, %s232
      %p244 = scmp.eq.s32.totalorder %s33, 1
      %p245 = por %p243, %p244
      %p247 = scmp.ne.s32.totalorder %s232, %s246
      %p248 = scmp.eq.s32.totalorder %s33, 0
      %p249 = por %p247, %p248
      %s251 = sadd.s32 %s250, 1
      %p254 = scmp.eq.s32.totalorder %s27, 1
      %p255 = scmp.ne.s32.totalorder %s250, %s252
      %p256 = scmp.eq.s32.totalorder %s27, 0
      %p257 = por %p255, %p256
      %p258 = scmp.ne.s32.totalorder %s250, %s252
      %p259 = scmp.eq.s32.totalorder %s32, 1
      %p260 = por %p258, %p259
      %p261 = scmp.ne.s32.totalorder %s252, %s253
      %p262 = scmp.eq.s32.totalorder %s32, 0
      %p263 = por %p261, %p262
      %p264 = scmp.ne.s32.totalorder %s252, %s253
      %p265 = scmp.eq.s32.totalorder %s33, 1
      %p266 = por %p264, %p265
      %p268 = scmp.ne.s32.totalorder %s253, %s267
      %p269 = scmp.eq.s32.totalorder %s33, 0
      %p270 = por %p268, %p269
      %s272 = sadd.s32 %s271, 1
      %p275 = scmp.eq.s32.totalorder %s27, 1
      %p276 = scmp.ne.s32.totalorder %s271, %s273
      %p277 = scmp.eq.s32.totalorder %s27, 0
      %p278 = por %p276, %p277
      %p279 = scmp.ne.s32.totalorder %s271, %s273
      %p280 = scmp.eq.s32.totalorder %s32, 1
      %p281 = por %p279, %p280
      %p282 = scmp.ne.s32.totalorder %s273, %s274
      %p283 = scmp.eq.s32.totalorder %s32, 0
      %p284 = por %p282, %p283
      %p285 = scmp.ne.s32.totalorder %s273, %s274
      %p286 = scmp.eq.s32.totalorder %s33, 1
      %p287 = por %p285, %p286
      %p289 = scmp.ne.s32.totalorder %s274, %s288
      %p290 = scmp.eq.s32.totalorder %s33, 0
      %p291 = por %p289, %p290
      %p292 = scmp.le.s32.totalorder 1, %s27
      %p293 = scmp.lt.s32.totalorder %s27, 3
      %p294 = pnand %p292, %p293
      %p295 = pneg %p294
      // Predicated region
      $region9: #{tpu_custom_call.1} parent=5 // pred_check
        _
      $region10: #{tpu_custom_call.1} parent=5 // pred_check_branch
        %297 = sbr.rel (%p294) target = $region12
      $region11: #{tpu_custom_call.1} parent=5 // pred_region
        %s298 = ssub.s32 %s27, 1
        // Predicated region
        $region13: #{tpu_custom_call.1} parent=11 // pred_check
          %p299 = pneg %p74
        $region14: #{tpu_custom_call.1} parent=11 // pred_check_branch
          %301 = sbr.rel (%p299) target = $region16
        $region15: #{tpu_custom_call.1} parent=11 // pred_region
          %s303 = ssub.s32 128, 128
          %304 = vsyncadd [#allocation8], %s303
          %s306 = sshll.u32 [#allocation7], 4
          %s307 = int_to_ptr.vmem [resolvable:$true] %s306
          %309 = dma.hbm_to_vmem [thread:$0]  %s1, 128, %s307, [#allocation8]
        $region16: #{tpu_custom_call.1} parent=11 // pred_fallthru
          _
        // Predicated region
        $region17: #{tpu_custom_call.1} parent=11 // pred_check
          %p310 = pneg %p95
        $region18: #{tpu_custom_call.1} parent=11 // pred_check_branch
          %312 = sbr.rel (%p310) target = $region20
        $region19: #{tpu_custom_call.1} parent=11 // pred_region
          %s314 = ssub.s32 384, 384
          %315 = vsyncadd [#allocation8], %s314
          %s316 = sshll.u32 [#allocation9], 4
          %s317 = int_to_ptr.vmem [resolvable:$true] %s316
          %322 = dma.hbm_to_vmem [thread:$0]  %s2, 384, %s317, [#allocation8], 192, 192, 12
        $region20: #{tpu_custom_call.1} parent=11 // pred_fallthru
          _
        // Predicated region
        $region21: #{tpu_custom_call.1} parent=11 // pred_check
          %p323 = pneg %p116
        $region22: #{tpu_custom_call.1} parent=11 // pred_check_branch
          %325 = sbr.rel (%p323) target = $region24
        $region23: #{tpu_custom_call.1} parent=11 // pred_region
          %s327 = ssub.s32 48, 48
          %328 = vsyncadd [#allocation11], %s327
          %s330 = sshll.u32 [#allocation10], 4
          %s331 = int_to_ptr.vmem [resolvable:$true] %s330
          %333 = dma.hbm_to_vmem [thread:$0]  %s3, 48, %s331, [#allocation11]
        $region24: #{tpu_custom_call.1} parent=11 // pred_fallthru
          _
        // Predicated region
        $region25: #{tpu_custom_call.1} parent=11 // pred_check
          %p334 = pneg %p137
        $region26: #{tpu_custom_call.1} parent=11 // pred_check_branch
          %336 = sbr.rel (%p334) target = $region28
        $region27: #{tpu_custom_call.1} parent=11 // pred_region
          %s338 = ssub.s32 3072, 3072
          %339 = vsyncadd [#allocation11], %s338
          %s340 = sshll.u32 [#allocation12], 4
          %s341 = int_to_ptr.vmem [resolvable:$true] %s340
          %346 = dma.hbm_to_vmem [thread:$0]  %s4, 3072, %s341, [#allocation11], 192, 192, 12
        $region28: #{tpu_custom_call.1} parent=11 // pred_fallthru
          _
        // Predicated region
        $region29: #{tpu_custom_call.1} parent=11 // pred_check
          %p347 = pneg %p158
        $region30: #{tpu_custom_call.1} parent=11 // pred_check_branch
          %349 = sbr.rel (%p347) target = $region32
        $region31: #{tpu_custom_call.1} parent=11 // pred_region
          %s351 = ssub.s32 16, 16
          %352 = vsyncadd [#allocation14], %s351
          %s354 = sshll.u32 [#allocation13], 4
          %s355 = int_to_ptr.vmem [resolvable:$true] %s354
          %357 = dma.hbm_to_vmem [thread:$0]  %s5, 16, %s355, [#allocation14]
        $region32: #{tpu_custom_call.1} parent=11 // pred_fallthru
          _
        // Predicated region
        $region33: #{tpu_custom_call.1} parent=11 // pred_check
          %p358 = pneg %p179
        $region34: #{tpu_custom_call.1} parent=11 // pred_check_branch
          %360 = sbr.rel (%p358) target = $region36
        $region35: #{tpu_custom_call.1} parent=11 // pred_region
          %s362 = ssub.s32 2048, 2048
          %363 = vsyncadd [#allocation14], %s362
          %s364 = sshll.u32 [#allocation15], 4
          %s365 = int_to_ptr.vmem [resolvable:$true] %s364
          %370 = dma.hbm_to_vmem [thread:$0]  %s6, 2048, %s365, [#allocation14], 128, 128, 8
        $region36: #{tpu_custom_call.1} parent=11 // pred_fallthru
          _
        // Predicated region
        $region37: #{tpu_custom_call.1} parent=11 // pred_check
          %p371 = pneg %p200
        $region38: #{tpu_custom_call.1} parent=11 // pred_check_branch
          %373 = sbr.rel (%p371) target = $region40
        $region39: #{tpu_custom_call.1} parent=11 // pred_region
          %s375 = ssub.s32 32, 32
          %376 = vsyncadd [#allocation17], %s375
          %s378 = sshll.u32 [#allocation16], 4
          %s379 = int_to_ptr.vmem [resolvable:$true] %s378
          %381 = dma.hbm_to_vmem [thread:$0]  %s7, 32, %s379, [#allocation17]
        $region40: #{tpu_custom_call.1} parent=11 // pred_fallthru
          _
        // Predicated region
        $region41: #{tpu_custom_call.1} parent=11 // pred_check
          %p382 = pneg %p221
        $region42: #{tpu_custom_call.1} parent=11 // pred_check_branch
          %384 = sbr.rel (%p382) target = $region44
        $region43: #{tpu_custom_call.1} parent=11 // pred_region
          %s386 = ssub.s32 128, 128
          %387 = vsyncadd [#allocation17], %s386
          %s389 = sshll.u32 [#allocation18], 4
          %s390 = int_to_ptr.vmem [resolvable:$true] %s389
          %392 = dma.hbm_to_vmem [thread:$0]  %s8, 128, %s390, [#allocation17]
        $region44: #{tpu_custom_call.1} parent=11 // pred_fallthru
          _
      $region12: #{tpu_custom_call.1} parent=5 // pred_fallthru
        _
      %p393 = scmp.lt.s32.totalorder %s27, 2
      // Predicated region
      $region45: #{tpu_custom_call.1} parent=5 // pred_check
        %p394 = pneg %p393
      $region46: #{tpu_custom_call.1} parent=5 // pred_check_branch
        %396 = sbr.rel (%p394) target = $region48
      $region47: #{tpu_custom_call.1} parent=5 // pred_region
        // Predicated region
        $region49: #{tpu_custom_call.1} parent=47 // pred_check
          %p397 = pneg %p47
        $region50: #{tpu_custom_call.1} parent=47 // pred_check_branch
          %399 = sbr.rel (%p397) target = $region52
        $region51: #{tpu_custom_call.1} parent=47 // pred_region
          %s400 = sand.u32 %s37, 1
          %s401 = scalar_lea.sflag [#allocation5], %s400
          %s402 = sand.u32 %s37, 1
          %s403 = smul.addr %s402, 32
          %s404 = scalar_lea.vmem [#allocation4], %s403
          %s405 = smul.u32 8, %s27
          %s407 = ssub.s32 512, 512
          %408 = vsyncadd %s401, %s407
          %s409 = smul.addr %s405, 64
          %s410 = scalar_lea.hbm %s0, %s409
          %s411 = sshll.u32 %s404, 4
          %s412 = int_to_ptr.vmem [resolvable:$true] %s411
          %417 = dma.hbm_to_vmem [thread:$0]  %s410, 512, %s412, %s401, 64, 64, 4
        $region52: #{tpu_custom_call.1} parent=47 // pred_fallthru
          _
      $region48: #{tpu_custom_call.1} parent=5 // pred_fallthru
        _
      %p418 = scmp.le.s32.totalorder 1, %s27
      %p419 = scmp.lt.s32.totalorder %s27, 3
      %p420 = pnand %p418, %p419
      %p421 = pneg %p420
      // Predicated region
      $region53: #{tpu_custom_call.1} parent=5 // pred_check
        _
      $region54: #{tpu_custom_call.1} parent=5 // pred_check_branch
        %423 = sbr.rel (%p420) target = $region56
      $region55: #{tpu_custom_call.1} parent=5 // pred_region
        %s424 = ssub.s32 %s27, 1
        %s425 = sand.u32 %s40, 1
        %s426 = scalar_lea.sflag [#allocation5], %s425
        %s427 = sand.u32 %s40, 1
        %s428 = smul.addr %s427, 32
        %s429 = scalar_lea.vmem [#allocation4], %s428
        // Predicated region
        $region57: #{tpu_custom_call.1} parent=55 // pred_check
          %p430 = pneg %p53
        $region58: #{tpu_custom_call.1} parent=55 // pred_check_branch
          %432 = sbr.rel (%p430) target = $region60
        $region59: #{tpu_custom_call.1} parent=55 // pred_region
          %433 = dma.done %s426, 512
        $region60: #{tpu_custom_call.1} parent=55 // pred_fallthru
          _
        // Predicated region
        $region61: #{tpu_custom_call.1} parent=55 // pred_check
          %p434 = pneg %p74
        $region62: #{tpu_custom_call.1} parent=55 // pred_check_branch
          %436 = sbr.rel (%p434) target = $region64
        $region63: #{tpu_custom_call.1} parent=55 // pred_region
          %437 = dma.done [#allocation8], 128
        $region64: #{tpu_custom_call.1} parent=55 // pred_fallthru
          _
        // Predicated region
        $region65: #{tpu_custom_call.1} parent=55 // pred_check
          %p438 = pneg %p95
        $region66: #{tpu_custom_call.1} parent=55 // pred_check_branch
          %440 = sbr.rel (%p438) target = $region68
        $region67: #{tpu_custom_call.1} parent=55 // pred_region
          %441 = dma.done [#allocation8], 384
        $region68: #{tpu_custom_call.1} parent=55 // pred_fallthru
          _
        // Predicated region
        $region69: #{tpu_custom_call.1} parent=55 // pred_check
          %p442 = pneg %p116
        $region70: #{tpu_custom_call.1} parent=55 // pred_check_branch
          %444 = sbr.rel (%p442) target = $region72
        $region71: #{tpu_custom_call.1} parent=55 // pred_region
          %445 = dma.done [#allocation11], 48
        $region72: #{tpu_custom_call.1} parent=55 // pred_fallthru
          _
        // Predicated region
        $region73: #{tpu_custom_call.1} parent=55 // pred_check
          %p446 = pneg %p137
        $region74: #{tpu_custom_call.1} parent=55 // pred_check_branch
          %448 = sbr.rel (%p446) target = $region76
        $region75: #{tpu_custom_call.1} parent=55 // pred_region
          %449 = dma.done [#allocation11], 3072
        $region76: #{tpu_custom_call.1} parent=55 // pred_fallthru
          _
        // Predicated region
        $region77: #{tpu_custom_call.1} parent=55 // pred_check
          %p450 = pneg %p158
        $region78: #{tpu_custom_call.1} parent=55 // pred_check_branch
          %452 = sbr.rel (%p450) target = $region80
        $region79: #{tpu_custom_call.1} parent=55 // pred_region
          %453 = dma.done [#allocation14], 16
        $region80: #{tpu_custom_call.1} parent=55 // pred_fallthru
          _
        // Predicated region
        $region81: #{tpu_custom_call.1} parent=55 // pred_check
          %p454 = pneg %p179
        $region82: #{tpu_custom_call.1} parent=55 // pred_check_branch
          %456 = sbr.rel (%p454) target = $region84
        $region83: #{tpu_custom_call.1} parent=55 // pred_region
          %457 = dma.done [#allocation14], 2048
        $region84: #{tpu_custom_call.1} parent=55 // pred_fallthru
          _
        // Predicated region
        $region85: #{tpu_custom_call.1} parent=55 // pred_check
          %p458 = pneg %p200
        $region86: #{tpu_custom_call.1} parent=55 // pred_check_branch
          %460 = sbr.rel (%p458) target = $region88
        $region87: #{tpu_custom_call.1} parent=55 // pred_region
          %461 = dma.done [#allocation17], 32
        $region88: #{tpu_custom_call.1} parent=55 // pred_fallthru
          _
        // Predicated region
        $region89: #{tpu_custom_call.1} parent=55 // pred_check
          %p462 = pneg %p221
        $region90: #{tpu_custom_call.1} parent=55 // pred_check_branch
          %464 = sbr.rel (%p462) target = $region92
        $region91: #{tpu_custom_call.1} parent=55 // pred_region
          %465 = dma.done [#allocation17], 128
        $region92: #{tpu_custom_call.1} parent=55 // pred_fallthru
          _
        %s466 = sand.u32 %s40, 1
        %s467 = scalar_lea.sflag [#allocation5], %s466
        %s468 = sand.u32 %s40, 1
        %s469 = smul.addr %s468, 32
        %s470 = scalar_lea.vmem [#allocation4], %s469
        %p471 = pneg %p53
        %p472 = pneg %p50
        %p473 = pneg %p74
        %p474 = pneg %p71
        %p475 = pneg %p95
        %p476 = pneg %p92
        %p477 = pneg %p116
        %p478 = pneg %p113
        %p479 = pneg %p137
        %p480 = pneg %p134
        %p481 = pneg %p158
        %p482 = pneg %p155
        %p483 = pneg %p179
        %p484 = pneg %p176
        %p485 = pneg %p200
        %p486 = pneg %p197
        %p487 = pneg %p221
        %p488 = pneg %p218
        %p489 = pneg %p242
        %p490 = pneg %p239
        %p491 = pneg %p263
        %p492 = pneg %p260
        %p493 = pneg %p284
        %p494 = pneg %p281
        %s495 = smul.u32 8, %s32
        %p497 = scmp.eq.s32.totalorder %s32, 0
        // Predicated region
        $region93: #{tpu_custom_call.1} parent=55 // pred_check
          %p498 = pneg %p497
        $region94: #{tpu_custom_call.1} parent=55 // pred_check_branch
          %500 = sbr.rel (%p498) target = $region96
        $region95: #{tpu_custom_call.1} parent=55 // pred_region
          %501 = vst [vmem:[#allocation2] sm:$0xff] 0.0
        $region96: #{tpu_custom_call.1} parent=55 // pred_fallthru
          _
        %v502 = vld [vmem:[%s429] sm:$0xf]
        %v503 = vld [vmem:[%s429 + $0x4] sm:$0xf]
        %v504 = vld [vmem:[%s429 + $0x8] sm:$0xf]
        %v505 = vld [vmem:[%s429 + $0xc] sm:$0xf]
        %v506 = vld [vmem:[%s429 + $0x10] sm:$0xf]
        %v507 = vld [vmem:[%s429 + $0x14] sm:$0xf]
        %v508 = vld [vmem:[%s429 + $0x18] sm:$0xf]
        %v509 = vld [vmem:[%s429 + $0x1c] sm:$0xf]
        %v510 = vld [vmem:[#allocation9] sm:$0xff]
        %v511 = vld [vmem:[#allocation9 + $0x8] sm:$0xf]
        %v512 = vld [vmem:[#allocation9 + $0xc] sm:$0xff]
        %v513 = vld [vmem:[#allocation9 + $0x14] sm:$0xf]
        %v514 = vld [vmem:[#allocation10] sm:$0x7]
        %v516 = vlaneseq
        %v517 = vshrl.u32 %v516, 7
        %v518 = vsub.s32 0, %v517
        %v519 = vrot.slane %v514, %v518
        %v520 = vlaneseq
        %v521 = vshrl.u32 %v520, 7
        %v522 = vsub.s32 1, %v521
        %v523 = vrot.slane %v514, %v522
        %v524 = vlaneseq
        %v525 = vshrl.u32 %v524, 7
        %v526 = vsub.s32 2, %v525
        %v527 = vrot.slane %v514, %v526
        %v539 = vunpack.c.l.b16 %v502
        %v540 = vunpack.c.l.b16 %v503
        %v541 = vunpack.c.l.b16 %v504
        %v542 = vunpack.c.l.b16 %v505
        %v543 = vunpack.c.l.b16 %v506
        %v544 = vunpack.c.l.b16 %v507
        %v545 = vunpack.c.l.b16 %v508
        %v546 = vunpack.c.l.b16 %v509
        %v547 = vpack.c.b16 %v540, %v539
        %v548 = vpack.c.b16 %v542, %v541
        %v549 = vpack.c.b16 %v544, %v543
        %v550 = vpack.c.b16 %v546, %v545
        %v555 = vunpack.c.l.b16 %v510
        %v556 = vunpack.c.h.b16 %v510
        %v557 = vunpack.c.l.b16 %v511
        %v558 = vunpack.c.l.b16 %v512
        %v559 = vunpack.c.h.b16 %v512
        %v560 = vunpack.c.l.b16 %v513
        %v561 = vpack.c.b16 %v558, %v555
        %v562 = vpack.c.b16 %v559, %v556
        %v563 = vpack.c.b16 %v560, %v557
        %vm567 = vcmask 130048
        %v569 = vsel %vm567, %v547, 0
        %v572 = vsel %vm567, %v548, 0
        %v575 = vsel %vm567, %v549, 0
        %v578 = vsel %vm567, %v550, 0
        %580 = vmatprep.subr.bf16.mxu0 %v562
        %581 = vmatpush1.bf16.msra.mxu0 %v561
        %582 = vmatprep.subr.bf16.mxu0 0
        %583 = vmatpush1.bf16.msra.mxu0 0
        %584 = vmatprep.subr.bf16.mxu0 0
        %585 = vmatpush1.bf16.msra.mxu0 0
        %586 = vmatprep.subr.bf16.mxu0 0
        %587 = vmatpush1.bf16.msra.mxu0 0
        %588 = vmatprep.subr.bf16.mxu0 0
        %589 = vmatpush1.bf16.msra.mxu0 0
        %590 = vmatprep.subr.bf16.mxu0 0
        %591 = vmatpush1.bf16.msra.mxu0 0
        %592 = vmatprep.subr.bf16.mxu0 0
        %593 = vmatpush1.bf16.msra.mxu0 0
        %594 = vmatprep.subr.bf16.mxu0 0
        %595 = vmatpush1.bf16.msra.mxu0 0
        %596 = vmatprep.subr.bf16.mxu0 0
        %597 = vmatpush1.bf16.msra.mxu0 0
        %598 = vmatprep.subr.bf16.mxu0 0
        %599 = vmatpush1.bf16.msra.mxu0 0
        %600 = vmatprep.subr.bf16.mxu0 0
        %601 = vmatpush1.bf16.msra.mxu0 0
        %602 = vmatprep.subr.bf16.mxu0 0
        %603 = vmatpush1.bf16.msra.mxu0 0
        %604 = vmatprep.subr.bf16.mxu0 0
        %605 = vmatpush1.bf16.msra.mxu0 0
        %606 = vmatprep.subr.bf16.mxu0 0
        %607 = vmatpush1.bf16.msra.mxu0 0
        %608 = vmatprep.subr.bf16.mxu0 0
        %609 = vmatpush1.bf16.msra.mxu0 0
        %610 = vmatprep.subr.bf16.mxu0 0
        %611 = vmatpush1.bf16.msra.mxu0 0
        %612 = vmatprep.mubr.bf16.mxu0 0
        %613 = vmatmul.mubr.bf16.gmra.mrb[0].mxu0 %v569
        %v614 = vpop.f32.mrb[0].mxu0
        %v615 = vadd.f32 %v519, %v614
        %v616 = vpop.f32.mrb[0].mxu0
        %v617 = vadd.f32 %v523, %v616
        %v618 = vpop.f32.mrb[0].mxu0
        %v619 = vadd.f32 %v519, %v618
        %v620 = vpop.f32.mrb[0].mxu0
        %v621 = vadd.f32 %v523, %v620
        %622 = vmatprep.mubr.bf16.mxu0 0
        %623 = vmatmul.mubr.bf16.gmra.mrb[0].mxu0 %v572
        %v624 = vpop.f32.mrb[0].mxu0
        %v625 = vadd.f32 %v519, %v624
        %v626 = vpop.f32.mrb[0].mxu0
        %v627 = vadd.f32 %v523, %v626
        %v628 = vpop.f32.mrb[0].mxu0
        %v629 = vadd.f32 %v519, %v628
        %v630 = vpop.f32.mrb[0].mxu0
        %v631 = vadd.f32 %v523, %v630
        %632 = vmatprep.mubr.bf16.mxu0 0
        %633 = vmatmul.mubr.bf16.gmra.mrb[0].mxu0 %v575
        %v634 = vpop.f32.mrb[0].mxu0
        %v635 = vadd.f32 %v519, %v634
        %v636 = vpop.f32.mrb[0].mxu0
        %v637 = vadd.f32 %v523, %v636
        %v638 = vpop.f32.mrb[0].mxu0
        %v639 = vadd.f32 %v519, %v638
        %v640 = vpop.f32.mrb[0].mxu0
        %v641 = vadd.f32 %v523, %v640
        %642 = vmatprep.mubr.bf16.mxu0 0
        %643 = vmatmul.mubr.bf16.gmra.mrb[0].mxu0 %v578
        %v644 = vpop.f32.mrb[0].mxu0
        %v645 = vadd.f32 %v519, %v644
        %v646 = vpop.f32.mrb[0].mxu0
        %v647 = vadd.f32 %v523, %v646
        %v648 = vpop.f32.mrb[0].mxu0
        %v649 = vadd.f32 %v519, %v648
        %v650 = vpop.f32.mrb[0].mxu0
        %v651 = vadd.f32 %v523, %v650
        %652 = vdwg.mxu0
        %653 = vmatprep.subr.bf16.mxu0 0
        %654 = vmatpush1.bf16.msra.mxu0 %v563
        %655 = vmatprep.subr.bf16.mxu0 0
        %656 = vmatpush1.bf16.msra.mxu0 0
        %657 = vmatprep.subr.bf16.mxu0 0
        %658 = vmatpush1.bf16.msra.mxu0 0
        %659 = vmatprep.subr.bf16.mxu0 0
        %660 = vmatpush1.bf16.msra.mxu0 0
        %661 = vmatprep.subr.bf16.mxu0 0
        %662 = vmatpush1.bf16.msra.mxu0 0
        %663 = vmatprep.subr.bf16.mxu0 0
        %664 = vmatpush1.bf16.msra.mxu0 0
        %665 = vmatprep.subr.bf16.mxu0 0
        %666 = vmatpush1.bf16.msra.mxu0 0
        %667 = vmatprep.subr.bf16.mxu0 0
        %668 = vmatpush1.bf16.msra.mxu0 0
        %669 = vmatprep.subr.bf16.mxu0 0
        %670 = vmatpush1.bf16.msra.mxu0 0
        %671 = vmatprep.subr.bf16.mxu0 0
        %672 = vmatpush1.bf16.msra.mxu0 0
        %673 = vmatprep.subr.bf16.mxu0 0
        %674 = vmatpush1.bf16.msra.mxu0 0
        %675 = vmatprep.subr.bf16.mxu0 0
        %676 = vmatpush1.bf16.msra.mxu0 0
        %677 = vmatprep.subr.bf16.mxu0 0
        %678 = vmatpush1.bf16.msra.mxu0 0
        %679 = vmatprep.subr.bf16.mxu0 0
        %680 = vmatpush1.bf16.msra.mxu0 0
        %681 = vmatprep.subr.bf16.mxu0 0
        %682 = vmatpush1.bf16.msra.mxu0 0
        %683 = vmatprep.subr.bf16.mxu0 0
        %684 = vmatpush1.bf16.msra.mxu0 0
        %685 = vmatprep.mubr.bf16.mxu0 0
        %686 = vmatmul.mubr.bf16.gmra.mrb[0].mxu0 %v569
        %v687 = vpop.f32.mrb[0].mxu0
        %v688 = vadd.f32 %v527, %v687
        %v689 = vpop.f32.mrb[0].mxu0
        %v690 = vpop.f32.mrb[0].mxu0
        %v691 = vadd.f32 %v527, %v690
        %v692 = vpop.f32.mrb[0].mxu0
        %693 = vmatprep.mubr.bf16.mxu0 0
        %694 = vmatmul.mubr.bf16.gmra.mrb[0].mxu0 %v572
        %v695 = vpop.f32.mrb[0].mxu0
        %v696 = vadd.f32 %v527, %v695
        %v697 = vpop.f32.mrb[0].mxu0
        %v698 = vpop.f32.mrb[0].mxu0
        %v699 = vadd.f32 %v527, %v698
        %v700 = vpop.f32.mrb[0].mxu0
        %701 = vmatprep.mubr.bf16.mxu0 0
        %702 = vmatmul.mubr.bf16.gmra.mrb[0].mxu0 %v575
        %v703 = vpop.f32.mrb[0].mxu0
        %v704 = vadd.f32 %v527, %v703
        %v705 = vpop.f32.mrb[0].mxu0
        %v706 = vpop.f32.mrb[0].mxu0
        %v707 = vadd.f32 %v527, %v706
        %v708 = vpop.f32.mrb[0].mxu0
        %709 = vmatprep.mubr.bf16.mxu0 0
        %710 = vmatmul.mubr.bf16.gmra.mrb[0].mxu0 %v578
        %v711 = vpop.f32.mrb[0].mxu0
        %v712 = vadd.f32 %v527, %v711
        %v713 = vpop.f32.mrb[0].mxu0
        %v714 = vpop.f32.mrb[0].mxu0
        %v715 = vadd.f32 %v527, %v714
        %v716 = vpop.f32.mrb[0].mxu0
        %717 = vdwg.mxu0
        %718 = vst [vmem:[#allocation3] sm:$0xff] %v615
        %719 = vst [vmem:[#allocation3 + $0x8] sm:$0xff] %v617
        %720 = vst [vmem:[#allocation3 + $0x10] sm:$0xff] %v688
        %721 = vst [vmem:[#allocation3 + $0x18] sm:$0xff] %v619
        %722 = vst [vmem:[#allocation3 + $0x20] sm:$0xff] %v621
        %723 = vst [vmem:[#allocation3 + $0x28] sm:$0xff] %v691
        %724 = vst [vmem:[#allocation3 + $0x30] sm:$0xff] %v625
        %725 = vst [vmem:[#allocation3 + $0x38] sm:$0xff] %v627
        %726 = vst [vmem:[#allocation3 + $0x40] sm:$0xff] %v696
        %727 = vst [vmem:[#allocation3 + $0x48] sm:$0xff] %v629
        %728 = vst [vmem:[#allocation3 + $0x50] sm:$0xff] %v631
        %729 = vst [vmem:[#allocation3 + $0x58] sm:$0xff] %v699
        %730 = vst [vmem:[#allocation3 + $0x60] sm:$0xff] %v635
        %731 = vst [vmem:[#allocation3 + $0x68] sm:$0xff] %v637
        %732 = vst [vmem:[#allocation3 + $0x70] sm:$0xff] %v704
        %733 = vst [vmem:[#allocation3 + $0x78] sm:$0xff] %v639
        %734 = vst [vmem:[#allocation3 + $0x80] sm:$0xff] %v641
        %735 = vst [vmem:[#allocation3 + $0x88] sm:$0xff] %v707
        %736 = vst [vmem:[#allocation3 + $0x90] sm:$0xff] %v645
        %737 = vst [vmem:[#allocation3 + $0x98] sm:$0xff] %v647
        %738 = vst [vmem:[#allocation3 + $0xa0] sm:$0xff] %v712
        %739 = vst [vmem:[#allocation3 + $0xa8] sm:$0xff] %v649
        %740 = vst [vmem:[#allocation3 + $0xb0] sm:$0xff] %v651
        %741 = vst [vmem:[#allocation3 + $0xb8] sm:$0xff] %v715
        %v742 = vld [vmem:[#allocation7] sm:$0xff]
        %v743 = vld [vmem:[#allocation12] sm:$0xff]
        %v744 = vld [vmem:[#allocation12 + $0x8] sm:$0xf]
        %v745 = vld [vmem:[#allocation12 + $0xc] sm:$0xff]
        %v746 = vld [vmem:[#allocation12 + $0x14] sm:$0xf]
        %v747 = vld [vmem:[#allocation12 + $0x18] sm:$0xff]
        %v748 = vld [vmem:[#allocation12 + $0x20] sm:$0xf]
        %v749 = vld [vmem:[#allocation12 + $0x24] sm:$0xff]
        %v750 = vld [vmem:[#allocation12 + $0x2c] sm:$0xf]
        %v751 = vld [vmem:[#allocation12 + $0x30] sm:$0xff]
        %v752 = vld [vmem:[#allocation12 + $0x38] sm:$0xf]
        %v753 = vld [vmem:[#allocation12 + $0x3c] sm:$0xff]
        %v754 = vld [vmem:[#allocation12 + $0x44] sm:$0xf]
        %v755 = vld [vmem:[#allocation12 + $0x48] sm:$0xff]
        %v756 = vld [vmem:[#allocation12 + $0x50] sm:$0xf]
        %v757 = vld [vmem:[#allocation12 + $0x54] sm:$0xff]
        %v758 = vld [vmem:[#allocation12 + $0x5c] sm:$0xf]
        %v759 = vld [vmem:[#allocation12 + $0x60] sm:$0xff]
        %v760 = vld [vmem:[#allocation12 + $0x68] sm:$0xf]
        %v761 = vld [vmem:[#allocation12 + $0x6c] sm:$0xff]
        %v762 = vld [vmem:[#allocation12 + $0x74] sm:$0xf]
        %v763 = vld [vmem:[#allocation12 + $0x78] sm:$0xff]
        %v764 = vld [vmem:[#allocation12 + $0x80] sm:$0xf]
        %v765 = vld [vmem:[#allocation12 + $0x84] sm:$0xff]
        %v766 = vld [vmem:[#allocation12 + $0x8c] sm:$0xf]
        %v767 = vld [vmem:[#allocation12 + $0x90] sm:$0xff]
        %v768 = vld [vmem:[#allocation12 + $0x98] sm:$0xf]
        %v769 = vld [vmem:[#allocation12 + $0x9c] sm:$0xff]
        %v770 = vld [vmem:[#allocation12 + $0xa4] sm:$0xf]
        %v771 = vld [vmem:[#allocation12 + $0xa8] sm:$0xff]
        %v772 = vld [vmem:[#allocation12 + $0xb0] sm:$0xf]
        %v773 = vld [vmem:[#allocation12 + $0xb4] sm:$0xff]
        %v774 = vld [vmem:[#allocation12 + $0xbc] sm:$0xf]
        %v775 = vld [vmem:[#allocation13] sm:$0x1]
        %s776 = smul.u32 %s32, 8
        %v777 = vld [vmem:[#allocation2] sm:$0xff]
        %v778 = vld [vmem:[#allocation3] sm:$0xff]
        %v779 = vld [vmem:[#allocation3 + $0x8] sm:$0xff]
        %v780 = vld [vmem:[#allocation3 + $0x10] sm:$0xff]
        %v781 = vpack.c.bf16 %v777, %v777
        %v814 = vunpack.c.l.b16 %v743
        %v815 = vunpack.c.h.b16 %v743
        %v816 = vunpack.c.l.b16 %v744
        %v817 = vunpack.c.l.b16 %v745
        %v818 = vunpack.c.h.b16 %v745
        %v819 = vunpack.c.l.b16 %v746
        %v820 = vunpack.c.l.b16 %v747
        %v821 = vunpack.c.h.b16 %v747
        %v822 = vunpack.c.l.b16 %v748
        %v823 = vunpack.c.l.b16 %v749
        %v824 = vunpack.c.h.b16 %v749
        %v825 = vunpack.c.l.b16 %v750
        %v826 = vunpack.c.l.b16 %v751
        %v827 = vunpack.c.h.b16 %v751
        %v828 = vunpack.c.l.b16 %v752
        %v829 = vunpack.c.l.b16 %v753
        %v830 = vunpack.c.h.b16 %v753
        %v831 = vunpack.c.l.b16 %v754
        %v832 = vunpack.c.l.b16 %v755
        %v833 = vunpack.c.h.b16 %v755
        %v834 = vunpack.c.l.b16 %v756
        %v835 = vunpack.c.l.b16 %v757
        %v836 = vunpack.c.h.b16 %v757
        %v837 = vunpack.c.l.b16 %v758
        %v838 = vunpack.c.l.b16 %v759
        %v839 = vunpack.c.h.b16 %v759
        %v840 = vunpack.c.l.b16 %v760
        %v841 = vunpack.c.l.b16 %v761
        %v842 = vunpack.c.h.b16 %v761
        %v843 = vunpack.c.l.b16 %v762
        %v844 = vunpack.c.l.b16 %v763
        %v845 = vunpack.c.h.b16 %v763
        %v846 = vunpack.c.l.b16 %v764
        %v847 = vunpack.c.l.b16 %v765
        %v848 = vunpack.c.h.b16 %v765
        %v849 = vunpack.c.l.b16 %v766
        %v850 = vunpack.c.l.b16 %v767
        %v851 = vunpack.c.h.b16 %v767
        %v852 = vunpack.c.l.b16 %v768
        %v853 = vunpack.c.l.b16 %v769
        %v854 = vunpack.c.h.b16 %v769
        %v855 = vunpack.c.l.b16 %v770
        %v856 = vunpack.c.l.b16 %v771
        %v857 = vunpack.c.h.b16 %v771
        %v858 = vunpack.c.l.b16 %v772
        %v859 = vunpack.c.l.b16 %v773
        %v860 = vunpack.c.h.b16 %v773
        %v861 = vunpack.c.l.b16 %v774
        %v862 = vpack.c.b16 %v817, %v814
        %v863 = vpack.c.b16 %v818, %v815
        %v864 = vpack.c.b16 %v819, %v816
        %v865 = vpack.c.b16 %v823, %v820
        %v866 = vpack.c.b16 %v824, %v821
        %v867 = vpack.c.b16 %v825, %v822
        %v868 = vpack.c.b16 %v829, %v826
        %v869 = vpack.c.b16 %v830, %v827
        %v870 = vpack.c.b16 %v831, %v828
        %v871 = vpack.c.b16 %v835, %v832
        %v872 = vpack.c.b16 %v836, %v833
        %v873 = vpack.c.b16 %v837, %v834
        %v874 = vpack.c.b16 %v841, %v838
        %v875 = vpack.c.b16 %v842, %v839
        %v876 = vpack.c.b16 %v843, %v840
        %v877 = vpack.c.b16 %v847, %v844
        %v878 = vpack.c.b16 %v848, %v845
        %v879 = vpack.c.b16 %v849, %v846
        %v880 = vpack.c.b16 %v853, %v850
        %v881 = vpack.c.b16 %v854, %v851
        %v882 = vpack.c.b16 %v855, %v852
        %v883 = vpack.c.b16 %v859, %v856
        %v884 = vpack.c.b16 %v860, %v857
        %v885 = vpack.c.b16 %v861, %v858
        %910 = vmatprep.subr.bf16.mxu0 %v863
        %911 = vmatpush1.bf16.msra.mxu0 %v862
        %912 = vmatprep.subr.bf16.mxu0 %v866
        %913 = vmatpush1.bf16.msra.mxu0 %v865
        %914 = vmatprep.subr.bf16.mxu0 %v869
        %915 = vmatpush1.bf16.msra.mxu0 %v868
        %916 = vmatprep.subr.bf16.mxu0 %v872
        %917 = vmatpush1.bf16.msra.mxu0 %v871
        %918 = vmatprep.subr.bf16.mxu0 %v875
        %919 = vmatpush1.bf16.msra.mxu0 %v874
        %920 = vmatprep.subr.bf16.mxu0 %v878
        %921 = vmatpush1.bf16.msra.mxu0 %v877
        %922 = vmatprep.subr.bf16.mxu0 %v881
        %923 = vmatpush1.bf16.msra.mxu0 %v880
        %924 = vmatprep.subr.bf16.mxu0 %v884
        %925 = vmatpush1.bf16.msra.mxu0 %v883
        %926 = vmatprep.subr.bf16.mxu0 0
        %927 = vmatpush1.bf16.msra.mxu0 0
        %928 = vmatprep.subr.bf16.mxu0 0
        %929 = vmatpush1.bf16.msra.mxu0 0
        %930 = vmatprep.subr.bf16.mxu0 0
        %931 = vmatpush1.bf16.msra.mxu0 0
        %932 = vmatprep.subr.bf16.mxu0 0
        %933 = vmatpush1.bf16.msra.mxu0 0
        %934 = vmatprep.subr.bf16.mxu0 0
        %935 = vmatpush1.bf16.msra.mxu0 0
        %936 = vmatprep.subr.bf16.mxu0 0
        %937 = vmatpush1.bf16.msra.mxu0 0
        %938 = vmatprep.subr.bf16.mxu0 0
        %939 = vmatpush1.bf16.msra.mxu0 0
        %940 = vmatprep.subr.bf16.mxu0 0
        %941 = vmatpush1.bf16.msra.mxu0 0
        %942 = vmatprep.mubr.bf16.mxu0 0
        %943 = vmatmul.mubr.bf16.gmra.mrb[0].mxu0 %v781
        %v944 = vpop.f32.mrb[0].mxu0
        %v945 = vadd.f32 0.0, %v944
        %v946 = vpop.f32.mrb[0].mxu0
        %v947 = vadd.f32 0.0, %v946
        %v948 = vpop.f32.mrb[0].mxu0
        %v949 = vpop.f32.mrb[0].mxu0
        %950 = vdwg.mxu0
        %951 = vmatprep.subr.bf16.mxu0 0
        %952 = vmatpush1.bf16.msra.mxu0 %v864
        %953 = vmatprep.subr.bf16.mxu0 0
        %954 = vmatpush1.bf16.msra.mxu0 %v867
        %955 = vmatprep.subr.bf16.mxu0 0
        %956 = vmatpush1.bf16.msra.mxu0 %v870
        %957 = vmatprep.subr.bf16.mxu0 0
        %958 = vmatpush1.bf16.msra.mxu0 %v873
        %959 = vmatprep.subr.bf16.mxu0 0
        %960 = vmatpush1.bf16.msra.mxu0 %v876
        %961 = vmatprep.subr.bf16.mxu0 0
        %962 = vmatpush1.bf16.msra.mxu0 %v879
        %963 = vmatprep.subr.bf16.mxu0 0
        %964 = vmatpush1.bf16.msra.mxu0 %v882
        %965 = vmatprep.subr.bf16.mxu0 0
        %966 = vmatpush1.bf16.msra.mxu0 %v885
        %967 = vmatprep.subr.bf16.mxu0 0
        %968 = vmatpush1.bf16.msra.mxu0 0
        %969 = vmatprep.subr.bf16.mxu0 0
        %970 = vmatpush1.bf16.msra.mxu0 0
        %971 = vmatprep.subr.bf16.mxu0 0
        %972 = vmatpush1.bf16.msra.mxu0 0
        %973 = vmatprep.subr.bf16.mxu0 0
        %974 = vmatpush1.bf16.msra.mxu0 0
        %975 = vmatprep.subr.bf16.mxu0 0
        %976 = vmatpush1.bf16.msra.mxu0 0
        %977 = vmatprep.subr.bf16.mxu0 0
        %978 = vmatpush1.bf16.msra.mxu0 0
        %979 = vmatprep.subr.bf16.mxu0 0
        %980 = vmatpush1.bf16.msra.mxu0 0
        %981 = vmatprep.subr.bf16.mxu0 0
        %982 = vmatpush1.bf16.msra.mxu0 0
        %983 = vmatprep.mubr.bf16.mxu0 0
        %984 = vmatmul.mubr.bf16.gmra.mrb[0].mxu0 %v781
        %v985 = vpop.f32.mrb[0].mxu0
        %v986 = vadd.f32 0.0, %v985
        %v987 = vpop.f32.mrb[0].mxu0
        %v988 = vpop.f32.mrb[0].mxu0
        %v989 = vpop.f32.mrb[0].mxu0
        %990 = vdwg.mxu0
        %v991 = vadd.f32 %v778, %v945
        %v992 = vxor.u32 %v991, 2147483648
        %v993 = vmul.f32 %v992, 1.442695
        %v994 = vpow.pop %v993
        %v995 = vadd.f32 %v994, 1.0
        %v996 = vrcp.pop %v995
        %v997 = vmul.f32 1.0, %v996
        %v998 = vadd.f32 %v779, %v947
        %v999 = vxor.u32 %v998, 2147483648
        %v1000 = vmul.f32 %v999, 1.442695
        %v1001 = vpow.pop %v1000
        %v1002 = vadd.f32 %v1001, 1.0
        %v1003 = vrcp.pop %v1002
        %v1004 = vmul.f32 1.0, %v1003
        %v1006 = vlaneseq
        %v1007 = vshrl.u32 %v1006, 7
        %v1008 = vsub.s32 0, %v1007
        %v1009 = vrot.slane %v775, %v1008
        %v1011 = vadd.f32 %v986, %v1009
        %v1012 = vmul.f32 %v997, %v1011
        %v1013 = vadd.f32 %v780, %v1012
        %v1014 = vtanh.pop %v1013
        %v1015 = vsub.f32 1.0, %v1004
        %v1016 = vmul.f32 %v1015, %v1014
        %v1017 = vmul.f32 %v1004, %v777
        %v1018 = vadd.f32 %v1016, %v1017
        %v1019 = vstv %s776
        %vm1020 = vcmp.gt.s32.totalorder %v742, %v1019
        %v1021 = vsel %vm1020, 1, 0
        %1022 = vset.pattern.permute.xlu0 0
        %1023 = vperm.xlu0 %1022, %v1021
        %v1024 = vpop.permute.xlu0 %1023
        %vm1025 = vcmp.eq.s32.totalorder %v1024, 1
        %v1026 = vsel %vm1025, %v1018, %v777
        %s1027 = scalar_lea.vmem [#allocation3], 24
        %v1028 = vld [vmem:[%s1027] sm:$0xff]
        %v1029 = vld [vmem:[%s1027 + $0x8] sm:$0xff]
        %v1030 = vld [vmem:[%s1027 + $0x10] sm:$0xff]
        %v1031 = vpack.c.bf16 %v1026, %v1026
        %1032 = vmatprep.subr.bf16.mxu0 %v863
        %1033 = vmatpush1.bf16.msra.mxu0 %v862
        %1034 = vmatprep.subr.bf16.mxu0 %v866
        %1035 = vmatpush1.bf16.msra.mxu0 %v865
        %1036 = vmatprep.subr.bf16.mxu0 %v869
        %1037 = vmatpush1.bf16.msra.mxu0 %v868
        %1038 = vmatprep.subr.bf16.mxu0 %v872
        %1039 = vmatpush1.bf16.msra.mxu0 %v871
        %1040 = vmatprep.subr.bf16.mxu0 %v875
        %1041 = vmatpush1.bf16.msra.mxu0 %v874
        %1042 = vmatprep.subr.bf16.mxu0 %v878
        %1043 = vmatpush1.bf16.msra.mxu0 %v877
        %1044 = vmatprep.subr.bf16.mxu0 %v881
        %1045 = vmatpush1.bf16.msra.mxu0 %v880
        %1046 = vmatprep.subr.bf16.mxu0 %v884
        %1047 = vmatpush1.bf16.msra.mxu0 %v883
        %1048 = vmatprep.subr.bf16.mxu0 0
        %1049 = vmatpush1.bf16.msra.mxu0 0
        %1050 = vmatprep.subr.bf16.mxu0 0
        %1051 = vmatpush1.bf16.msra.mxu0 0
        %1052 = vmatprep.subr.bf16.mxu0 0
        %1053 = vmatpush1.bf16.msra.mxu0 0
        %1054 = vmatprep.subr.bf16.mxu0 0
        %1055 = vmatpush1.bf16.msra.mxu0 0
        %1056 = vmatprep.subr.bf16.mxu0 0
        %1057 = vmatpush1.bf16.msra.mxu0 0
        %1058 = vmatprep.subr.bf16.mxu0 0
        %1059 = vmatpush1.bf16.msra.mxu0 0
        %1060 = vmatprep.subr.bf16.mxu0 0
        %1061 = vmatpush1.bf16.msra.mxu0 0
        %1062 = vmatprep.subr.bf16.mxu0 0
        %1063 = vmatpush1.bf16.msra.mxu0 0
        %1064 = vmatprep.mubr.bf16.mxu0 0
        %1065 = vmatmul.mubr.bf16.gmra.mrb[0].mxu0 %v1031
        %v1066 = vpop.f32.mrb[0].mxu0
        %v1067 = vadd.f32 0.0, %v1066
        %v1068 = vpop.f32.mrb[0].mxu0
        %v1069 = vadd.f32 0.0, %v1068
        %v1070 = vpop.f32.mrb[0].mxu0
        %v1071 = vpop.f32.mrb[0].mxu0
        %1072 = vdwg.mxu0
        %1073 = vmatprep.subr.bf16.mxu0 0
        %1074 = vmatpush1.bf16.msra.mxu0 %v864
        %1075 = vmatprep.subr.bf16.mxu0 0
        %1076 = vmatpush1.bf16.msra.mxu0 %v867
        %1077 = vmatprep.subr.bf16.mxu0 0
        %1078 = vmatpush1.bf16.msra.mxu0 %v870
        %1079 = vmatprep.subr.bf16.mxu0 0
        %1080 = vmatpush1.bf16.msra.mxu0 %v873
        %1081 = vmatprep.subr.bf16.mxu0 0
        %1082 = vmatpush1.bf16.msra.mxu0 %v876
        %1083 = vmatprep.subr.bf16.mxu0 0
        %1084 = vmatpush1.bf16.msra.mxu0 %v879
        %1085 = vmatprep.subr.bf16.mxu0 0
        %1086 = vmatpush1.bf16.msra.mxu0 %v882
        %1087 = vmatprep.subr.bf16.mxu0 0
        %1088 = vmatpush1.bf16.msra.mxu0 %v885
        %1089 = vmatprep.subr.bf16.mxu0 0
        %1090 = vmatpush1.bf16.msra.mxu0 0
        %1091 = vmatprep.subr.bf16.mxu0 0
        %1092 = vmatpush1.bf16.msra.mxu0 0
        %1093 = vmatprep.subr.bf16.mxu0 0
        %1094 = vmatpush1.bf16.msra.mxu0 0
        %1095 = vmatprep.subr.bf16.mxu0 0
        %1096 = vmatpush1.bf16.msra.mxu0 0
        %1097 = vmatprep.subr.bf16.mxu0 0
        %1098 = vmatpush1.bf16.msra.mxu0 0
        %1099 = vmatprep.subr.bf16.mxu0 0
        %1100 = vmatpush1.bf16.msra.mxu0 0
        %1101 = vmatprep.subr.bf16.mxu0 0
        %1102 = vmatpush1.bf16.msra.mxu0 0
        %1103 = vmatprep.subr.bf16.mxu0 0
        %1104 = vmatpush1.bf16.msra.mxu0 0
        %1105 = vmatprep.mubr.bf16.mxu0 0
        %1106 = vmatmul.mubr.bf16.gmra.mrb[0].mxu0 %v1031
        %v1107 = vpop.f32.mrb[0].mxu0
        %v1108 = vadd.f32 0.0, %v1107
        %v1109 = vpop.f32.mrb[0].mxu0
        %v1110 = vpop.f32.mrb[0].mxu0
        %v1111 = vpop.f32.mrb[0].mxu0
        %1112 = vdwg.mxu0
        %v1113 = vadd.f32 %v1028, %v1067
        %v1114 = vxor.u32 %v1113, 2147483648
        %v1115 = vmul.f32 %v1114, 1.442695
        %v1116 = vpow.pop %v1115
        %v1117 = vadd.f32 %v1116, 1.0
        %v1118 = vrcp.pop %v1117
        %v1119 = vmul.f32 1.0, %v1118
        %v1120 = vadd.f32 %v1029, %v1069
        %v1121 = vxor.u32 %v1120, 2147483648
        %v1122 = vmul.f32 %v1121, 1.442695
        %v1123 = vpow.pop %v1122
        %v1124 = vadd.f32 %v1123, 1.0
        %v1125 = vrcp.pop %v1124
        %v1126 = vmul.f32 1.0, %v1125
        %v1127 = vadd.f32 %v1108, %v1009
        %v1128 = vmul.f32 %v1119, %v1127
        %v1129 = vadd.f32 %v1030, %v1128
        %v1130 = vtanh.pop %v1129
        %v1131 = vsub.f32 1.0, %v1126
        %v1132 = vmul.f32 %v1131, %v1130
        %v1133 = vmul.f32 %v1126, %v1026
        %v1134 = vadd.f32 %v1132, %v1133
        %s1135 = sadd.s32 %s776, 1
        %v1136 = vstv %s1135
        %vm1137 = vcmp.gt.s32.totalorder %v742, %v1136
        %v1138 = vsel %vm1137, 1, 0
        %1139 = vset.pattern.permute.xlu0 0
        %1140 = vperm.xlu0 %1139, %v1138
        %v1141 = vpop.permute.xlu0 %1140
        %vm1142 = vcmp.eq.s32.totalorder %v1141, 1
        %v1143 = vsel %vm1142, %v1134, %v1026
        %s1144 = scalar_lea.vmem [#allocation3], 48
        %v1145 = vld [vmem:[%s1144] sm:$0xff]
        %v1146 = vld [vmem:[%s1144 + $0x8] sm:$0xff]
        %v1147 = vld [vmem:[%s1144 + $0x10] sm:$0xff]
        %v1148 = vpack.c.bf16 %v1143, %v1143
        %1149 = vmatprep.subr.bf16.mxu0 %v863
        %1150 = vmatpush1.bf16.msra.mxu0 %v862
        %1151 = vmatprep.subr.bf16.mxu0 %v866
        %1152 = vmatpush1.bf16.msra.mxu0 %v865
        %1153 = vmatprep.subr.bf16.mxu0 %v869
        %1154 = vmatpush1.bf16.msra.mxu0 %v868
        %1155 = vmatprep.subr.bf16.mxu0 %v872
        %1156 = vmatpush1.bf16.msra.mxu0 %v871
        %1157 = vmatprep.subr.bf16.mxu0 %v875
        %1158 = vmatpush1.bf16.msra.mxu0 %v874
        %1159 = vmatprep.subr.bf16.mxu0 %v878
        %1160 = vmatpush1.bf16.msra.mxu0 %v877
        %1161 = vmatprep.subr.bf16.mxu0 %v881
        %1162 = vmatpush1.bf16.msra.mxu0 %v880
        %1163 = vmatprep.subr.bf16.mxu0 %v884
        %1164 = vmatpush1.bf16.msra.mxu0 %v883
        %1165 = vmatprep.subr.bf16.mxu0 0
        %1166 = vmatpush1.bf16.msra.mxu0 0
        %1167 = vmatprep.subr.bf16.mxu0 0
        %1168 = vmatpush1.bf16.msra.mxu0 0
        %1169 = vmatprep.subr.bf16.mxu0 0
        %1170 = vmatpush1.bf16.msra.mxu0 0
        %1171 = vmatprep.subr.bf16.mxu0 0
        %1172 = vmatpush1.bf16.msra.mxu0 0
        %1173 = vmatprep.subr.bf16.mxu0 0
        %1174 = vmatpush1.bf16.msra.mxu0 0
        %1175 = vmatprep.subr.bf16.mxu0 0
        %1176 = vmatpush1.bf16.msra.mxu0 0
        %1177 = vmatprep.subr.bf16.mxu0 0
        %1178 = vmatpush1.bf16.msra.mxu0 0
        %1179 = vmatprep.subr.bf16.mxu0 0
        %1180 = vmatpush1.bf16.msra.mxu0 0
        %1181 = vmatprep.mubr.bf16.mxu0 0
        %1182 = vmatmul.mubr.bf16.gmra.mrb[0].mxu0 %v1148
        %v1183 = vpop.f32.mrb[0].mxu0
        %v1184 = vadd.f32 0.0, %v1183
        %v1185 = vpop.f32.mrb[0].mxu0
        %v1186 = vadd.f32 0.0, %v1185
        %v1187 = vpop.f32.mrb[0].mxu0
        %v1188 = vpop.f32.mrb[0].mxu0
        %1189 = vdwg.mxu0
        %1190 = vmatprep.subr.bf16.mxu0 0
        %1191 = vmatpush1.bf16.msra.mxu0 %v864
        %1192 = vmatprep.subr.bf16.mxu0 0
        %1193 = vmatpush1.bf16.msra.mxu0 %v867
        %1194 = vmatprep.subr.bf16.mxu0 0
        %1195 = vmatpush1.bf16.msra.mxu0 %v870
        %1196 = vmatprep.subr.bf16.mxu0 0
        %1197 = vmatpush1.bf16.msra.mxu0 %v873
        %1198 = vmatprep.subr.bf16.mxu0 0
        %1199 = vmatpush1.bf16.msra.mxu0 %v876
        %1200 = vmatprep.subr.bf16.mxu0 0
        %1201 = vmatpush1.bf16.msra.mxu0 %v879
        %1202 = vmatprep.subr.bf16.mxu0 0
        %1203 = vmatpush1.bf16.msra.mxu0 %v882
        %1204 = vmatprep.subr.bf16.mxu0 0
        %1205 = vmatpush1.bf16.msra.mxu0 %v885
        %1206 = vmatprep.subr.bf16.mxu0 0
        %1207 = vmatpush1.bf16.msra.mxu0 0
        %1208 = vmatprep.subr.bf16.mxu0 0
        %1209 = vmatpush1.bf16.msra.mxu0 0
        %1210 = vmatprep.subr.bf16.mxu0 0
        %1211 = vmatpush1.bf16.msra.mxu0 0
        %1212 = vmatprep.subr.bf16.mxu0 0
        %1213 = vmatpush1.bf16.msra.mxu0 0
        %1214 = vmatprep.subr.bf16.mxu0 0
        %1215 = vmatpush1.bf16.msra.mxu0 0
        %1216 = vmatprep.subr.bf16.mxu0 0
        %1217 = vmatpush1.bf16.msra.mxu0 0
        %1218 = vmatprep.subr.bf16.mxu0 0
        %1219 = vmatpush1.bf16.msra.mxu0 0
        %1220 = vmatprep.subr.bf16.mxu0 0
        %1221 = vmatpush1.bf16.msra.mxu0 0
        %1222 = vmatprep.mubr.bf16.mxu0 0
        %1223 = vmatmul.mubr.bf16.gmra.mrb[0].mxu0 %v1148
        %v1224 = vpop.f32.mrb[0].mxu0
        %v1225 = vadd.f32 0.0, %v1224
        %v1226 = vpop.f32.mrb[0].mxu0
        %v1227 = vpop.f32.mrb[0].mxu0
        %v1228 = vpop.f32.mrb[0].mxu0
        %1229 = vdwg.mxu0
        %v1230 = vadd.f32 %v1145, %v1184
        %v1231 = vxor.u32 %v1230, 2147483648
        %v1232 = vmul.f32 %v1231, 1.442695
        %v1233 = vpow.pop %v1232
        %v1234 = vadd.f32 %v1233, 1.0
        %v1235 = vrcp.pop %v1234
        %v1236 = vmul.f32 1.0, %v1235
        %v1237 = vadd.f32 %v1146, %v1186
        %v1238 = vxor.u32 %v1237, 2147483648
        %v1239 = vmul.f32 %v1238, 1.442695
        %v1240 = vpow.pop %v1239
        %v1241 = vadd.f32 %v1240, 1.0
        %v1242 = vrcp.pop %v1241
        %v1243 = vmul.f32 1.0, %v1242
        %v1244 = vadd.f32 %v1225, %v1009
        %v1245 = vmul.f32 %v1236, %v1244
        %v1246 = vadd.f32 %v1147, %v1245
        %v1247 = vtanh.pop %v1246
        %v1248 = vsub.f32 1.0, %v1243
        %v1249 = vmul.f32 %v1248, %v1247
        %v1250 = vmul.f32 %v1243, %v1143
        %v1251 = vadd.f32 %v1249, %v1250
        %s1252 = sadd.s32 %s776, 2
        %v1253 = vstv %s1252
        %vm1254 = vcmp.gt.s32.totalorder %v742, %v1253
        %v1255 = vsel %vm1254, 1, 0
        %1256 = vset.pattern.permute.xlu0 0
        %1257 = vperm.xlu0 %1256, %v1255
        %v1258 = vpop.permute.xlu0 %1257
        %vm1259 = vcmp.eq.s32.totalorder %v1258, 1
        %v1260 = vsel %vm1259, %v1251, %v1143
        %s1261 = scalar_lea.vmem [#allocation3], 72
        %v1262 = vld [vmem:[%s1261] sm:$0xff]
        %v1263 = vld [vmem:[%s1261 + $0x8] sm:$0xff]
        %v1264 = vld [vmem:[%s1261 + $0x10] sm:$0xff]
        %v1265 = vpack.c.bf16 %v1260, %v1260
        %1266 = vmatprep.subr.bf16.mxu0 %v863
        %1267 = vmatpush1.bf16.msra.mxu0 %v862
        %1268 = vmatprep.subr.bf16.mxu0 %v866
        %1269 = vmatpush1.bf16.msra.mxu0 %v865
        %1270 = vmatprep.subr.bf16.mxu0 %v869
        %1271 = vmatpush1.bf16.msra.mxu0 %v868
        %1272 = vmatprep.subr.bf16.mxu0 %v872
        %1273 = vmatpush1.bf16.msra.mxu0 %v871
        %1274 = vmatprep.subr.bf16.mxu0 %v875
        %1275 = vmatpush1.bf16.msra.mxu0 %v874
        %1276 = vmatprep.subr.bf16.mxu0 %v878
        %1277 = vmatpush1.bf16.msra.mxu0 %v877
        %1278 = vmatprep.subr.bf16.mxu0 %v881
        %1279 = vmatpush1.bf16.msra.mxu0 %v880
        %1280 = vmatprep.subr.bf16.mxu0 %v884
        %1281 = vmatpush1.bf16.msra.mxu0 %v883
        %1282 = vmatprep.subr.bf16.mxu0 0
        %1283 = vmatpush1.bf16.msra.mxu0 0
        %1284 = vmatprep.subr.bf16.mxu0 0
        %1285 = vmatpush1.bf16.msra.mxu0 0
        %1286 = vmatprep.subr.bf16.mxu0 0
        %1287 = vmatpush1.bf16.msra.mxu0 0
        %1288 = vmatprep.subr.bf16.mxu0 0
        %1289 = vmatpush1.bf16.msra.mxu0 0
        %1290 = vmatprep.subr.bf16.mxu0 0
        %1291 = vmatpush1.bf16.msra.mxu0 0
        %1292 = vmatprep.subr.bf16.mxu0 0
        %1293 = vmatpush1.bf16.msra.mxu0 0
        %1294 = vmatprep.subr.bf16.mxu0 0
        %1295 = vmatpush1.bf16.msra.mxu0 0
        %1296 = vmatprep.subr.bf16.mxu0 0
        %1297 = vmatpush1.bf16.msra.mxu0 0
        %1298 = vmatprep.mubr.bf16.mxu0 0
        %1299 = vmatmul.mubr.bf16.gmra.mrb[0].mxu0 %v1265
        %v1300 = vpop.f32.mrb[0].mxu0
        %v1301 = vadd.f32 0.0, %v1300
        %v1302 = vpop.f32.mrb[0].mxu0
        %v1303 = vadd.f32 0.0, %v1302
        %v1304 = vpop.f32.mrb[0].mxu0
        %v1305 = vpop.f32.mrb[0].mxu0
        %1306 = vdwg.mxu0
        %1307 = vmatprep.subr.bf16.mxu0 0
        %1308 = vmatpush1.bf16.msra.mxu0 %v864
        %1309 = vmatprep.subr.bf16.mxu0 0
        %1310 = vmatpush1.bf16.msra.mxu0 %v867
        %1311 = vmatprep.subr.bf16.mxu0 0
        %1312 = vmatpush1.bf16.msra.mxu0 %v870
        %1313 = vmatprep.subr.bf16.mxu0 0
        %1314 = vmatpush1.bf16.msra.mxu0 %v873
        %1315 = vmatprep.subr.bf16.mxu0 0
        %1316 = vmatpush1.bf16.msra.mxu0 %v876
        %1317 = vmatprep.subr.bf16.mxu0 0
        %1318 = vmatpush1.bf16.msra.mxu0 %v879
        %1319 = vmatprep.subr.bf16.mxu0 0
        %1320 = vmatpush1.bf16.msra.mxu0 %v882
        %1321 = vmatprep.subr.bf16.mxu0 0
        %1322 = vmatpush1.bf16.msra.mxu0 %v885
        %1323 = vmatprep.subr.bf16.mxu0 0
        %1324 = vmatpush1.bf16.msra.mxu0 0
        %1325 = vmatprep.subr.bf16.mxu0 0
        %1326 = vmatpush1.bf16.msra.mxu0 0
        %1327 = vmatprep.subr.bf16.mxu0 0
        %1328 = vmatpush1.bf16.msra.mxu0 0
        %1329 = vmatprep.subr.bf16.mxu0 0
        %1330 = vmatpush1.bf16.msra.mxu0 0
        %1331 = vmatprep.subr.bf16.mxu0 0
        %1332 = vmatpush1.bf16.msra.mxu0 0
        %1333 = vmatprep.subr.bf16.mxu0 0
        %1334 = vmatpush1.bf16.msra.mxu0 0
        %1335 = vmatprep.subr.bf16.mxu0 0
        %1336 = vmatpush1.bf16.msra.mxu0 0
        %1337 = vmatprep.subr.bf16.mxu0 0
        %1338 = vmatpush1.bf16.msra.mxu0 0
        %1339 = vmatprep.mubr.bf16.mxu0 0
        %1340 = vmatmul.mubr.bf16.gmra.mrb[0].mxu0 %v1265
        %v1341 = vpop.f32.mrb[0].mxu0
        %v1342 = vadd.f32 0.0, %v1341
        %v1343 = vpop.f32.mrb[0].mxu0
        %v1344 = vpop.f32.mrb[0].mxu0
        %v1345 = vpop.f32.mrb[0].mxu0
        %1346 = vdwg.mxu0
        %v1347 = vadd.f32 %v1262, %v1301
        %v1348 = vxor.u32 %v1347, 2147483648
        %v1349 = vmul.f32 %v1348, 1.442695
        %v1350 = vpow.pop %v1349
        %v1351 = vadd.f32 %v1350, 1.0
        %v1352 = vrcp.pop %v1351
        %v1353 = vmul.f32 1.0, %v1352
        %v1354 = vadd.f32 %v1263, %v1303
        %v1355 = vxor.u32 %v1354, 2147483648
        %v1356 = vmul.f32 %v1355, 1.442695
        %v1357 = vpow.pop %v1356
        %v1358 = vadd.f32 %v1357, 1.0
        %v1359 = vrcp.pop %v1358
        %v1360 = vmul.f32 1.0, %v1359
        %v1361 = vadd.f32 %v1342, %v1009
        %v1362 = vmul.f32 %v1353, %v1361
        %v1363 = vadd.f32 %v1264, %v1362
        %v1364 = vtanh.pop %v1363
        %v1365 = vsub.f32 1.0, %v1360
        %v1366 = vmul.f32 %v1365, %v1364
        %v1367 = vmul.f32 %v1360, %v1260
        %v1368 = vadd.f32 %v1366, %v1367
        %s1369 = sadd.s32 %s776, 3
        %v1370 = vstv %s1369
        %vm1371 = vcmp.gt.s32.totalorder %v742, %v1370
        %v1372 = vsel %vm1371, 1, 0
        %1373 = vset.pattern.permute.xlu0 0
        %1374 = vperm.xlu0 %1373, %v1372
        %v1375 = vpop.permute.xlu0 %1374
        %vm1376 = vcmp.eq.s32.totalorder %v1375, 1
        %v1377 = vsel %vm1376, %v1368, %v1260
        %s1378 = scalar_lea.vmem [#allocation3], 96
        %v1379 = vld [vmem:[%s1378] sm:$0xff]
        %v1380 = vld [vmem:[%s1378 + $0x8] sm:$0xff]
        %v1381 = vld [vmem:[%s1378 + $0x10] sm:$0xff]
        %v1382 = vpack.c.bf16 %v1377, %v1377
        %1383 = vmatprep.subr.bf16.mxu0 %v863
        %1384 = vmatpush1.bf16.msra.mxu0 %v862
        %1385 = vmatprep.subr.bf16.mxu0 %v866
        %1386 = vmatpush1.bf16.msra.mxu0 %v865
        %1387 = vmatprep.subr.bf16.mxu0 %v869
        %1388 = vmatpush1.bf16.msra.mxu0 %v868
        %1389 = vmatprep.subr.bf16.mxu0 %v872
        %1390 = vmatpush1.bf16.msra.mxu0 %v871
        %1391 = vmatprep.subr.bf16.mxu0 %v875
        %1392 = vmatpush1.bf16.msra.mxu0 %v874
        %1393 = vmatprep.subr.bf16.mxu0 %v878
        %1394 = vmatpush1.bf16.msra.mxu0 %v877
        %1395 = vmatprep.subr.bf16.mxu0 %v881
        %1396 = vmatpush1.bf16.msra.mxu0 %v880
        %1397 = vmatprep.subr.bf16.mxu0 %v884
        %1398 = vmatpush1.bf16.msra.mxu0 %v883
        %1399 = vmatprep.subr.bf16.mxu0 0
        %1400 = vmatpush1.bf16.msra.mxu0 0
        %1401 = vmatprep.subr.bf16.mxu0 0
        %1402 = vmatpush1.bf16.msra.mxu0 0
        %1403 = vmatprep.subr.bf16.mxu0 0
        %1404 = vmatpush1.bf16.msra.mxu0 0
        %1405 = vmatprep.subr.bf16.mxu0 0
        %1406 = vmatpush1.bf16.msra.mxu0 0
        %1407 = vmatprep.subr.bf16.mxu0 0
        %1408 = vmatpush1.bf16.msra.mxu0 0
        %1409 = vmatprep.subr.bf16.mxu0 0
        %1410 = vmatpush1.bf16.msra.mxu0 0
        %1411 = vmatprep.subr.bf16.mxu0 0
        %1412 = vmatpush1.bf16.msra.mxu0 0
        %1413 = vmatprep.subr.bf16.mxu0 0
        %1414 = vmatpush1.bf16.msra.mxu0 0
        %1415 = vmatprep.mubr.bf16.mxu0 0
        %1416 = vmatmul.mubr.bf16.gmra.mrb[0].mxu0 %v1382
        %v1417 = vpop.f32.mrb[0].mxu0
        %v1418 = vadd.f32 0.0, %v1417
        %v1419 = vpop.f32.mrb[0].mxu0
        %v1420 = vadd.f32 0.0, %v1419
        %v1421 = vpop.f32.mrb[0].mxu0
        %v1422 = vpop.f32.mrb[0].mxu0
        %1423 = vdwg.mxu0
        %1424 = vmatprep.subr.bf16.mxu0 0
        %1425 = vmatpush1.bf16.msra.mxu0 %v864
        %1426 = vmatprep.subr.bf16.mxu0 0
        %1427 = vmatpush1.bf16.msra.mxu0 %v867
        %1428 = vmatprep.subr.bf16.mxu0 0
        %1429 = vmatpush1.bf16.msra.mxu0 %v870
        %1430 = vmatprep.subr.bf16.mxu0 0
        %1431 = vmatpush1.bf16.msra.mxu0 %v873
        %1432 = vmatprep.subr.bf16.mxu0 0
        %1433 = vmatpush1.bf16.msra.mxu0 %v876
        %1434 = vmatprep.subr.bf16.mxu0 0
        %1435 = vmatpush1.bf16.msra.mxu0 %v879
        %1436 = vmatprep.subr.bf16.mxu0 0
        %1437 = vmatpush1.bf16.msra.mxu0 %v882
        %1438 = vmatprep.subr.bf16.mxu0 0
        %1439 = vmatpush1.bf16.msra.mxu0 %v885
        %1440 = vmatprep.subr.bf16.mxu0 0
        %1441 = vmatpush1.bf16.msra.mxu0 0
        %1442 = vmatprep.subr.bf16.mxu0 0
        %1443 = vmatpush1.bf16.msra.mxu0 0
        %1444 = vmatprep.subr.bf16.mxu0 0
        %1445 = vmatpush1.bf16.msra.mxu0 0
        %1446 = vmatprep.subr.bf16.mxu0 0
        %1447 = vmatpush1.bf16.msra.mxu0 0
        %1448 = vmatprep.subr.bf16.mxu0 0
        %1449 = vmatpush1.bf16.msra.mxu0 0
        %1450 = vmatprep.subr.bf16.mxu0 0
        %1451 = vmatpush1.bf16.msra.mxu0 0
        %1452 = vmatprep.subr.bf16.mxu0 0
        %1453 = vmatpush1.bf16.msra.mxu0 0
        %1454 = vmatprep.subr.bf16.mxu0 0
        %1455 = vmatpush1.bf16.msra.mxu0 0
        %1456 = vmatprep.mubr.bf16.mxu0 0
        %1457 = vmatmul.mubr.bf16.gmra.mrb[0].mxu0 %v1382
        %v1458 = vpop.f32.mrb[0].mxu0
        %v1459 = vadd.f32 0.0, %v1458
        %v1460 = vpop.f32.mrb[0].mxu0
        %v1461 = vpop.f32.mrb[0].mxu0
        %v1462 = vpop.f32.mrb[0].mxu0
        %1463 = vdwg.mxu0
        %v1464 = vadd.f32 %v1379, %v1418
        %v1465 = vxor.u32 %v1464, 2147483648
        %v1466 = vmul.f32 %v1465, 1.442695
        %v1467 = vpow.pop %v1466
        %v1468 = vadd.f32 %v1467, 1.0
        %v1469 = vrcp.pop %v1468
        %v1470 = vmul.f32 1.0, %v1469
        %v1471 = vadd.f32 %v1380, %v1420
        %v1472 = vxor.u32 %v1471, 2147483648
        %v1473 = vmul.f32 %v1472, 1.442695
        %v1474 = vpow.pop %v1473
        %v1475 = vadd.f32 %v1474, 1.0
        %v1476 = vrcp.pop %v1475
        %v1477 = vmul.f32 1.0, %v1476
        %v1478 = vadd.f32 %v1459, %v1009
        %v1479 = vmul.f32 %v1470, %v1478
        %v1480 = vadd.f32 %v1381, %v1479
        %v1481 = vtanh.pop %v1480
        %v1482 = vsub.f32 1.0, %v1477
        %v1483 = vmul.f32 %v1482, %v1481
        %v1484 = vmul.f32 %v1477, %v1377
        %v1485 = vadd.f32 %v1483, %v1484
        %s1486 = sadd.s32 %s776, 4
        %v1487 = vstv %s1486
        %vm1488 = vcmp.gt.s32.totalorder %v742, %v1487
        %v1489 = vsel %vm1488, 1, 0
        %1490 = vset.pattern.permute.xlu0 0
        %1491 = vperm.xlu0 %1490, %v1489
        %v1492 = vpop.permute.xlu0 %1491
        %vm1493 = vcmp.eq.s32.totalorder %v1492, 1
        %v1494 = vsel %vm1493, %v1485, %v1377
        %s1495 = scalar_lea.vmem [#allocation3], 120
        %v1496 = vld [vmem:[%s1495] sm:$0xff]
        %v1497 = vld [vmem:[%s1495 + $0x8] sm:$0xff]
        %v1498 = vld [vmem:[%s1495 + $0x10] sm:$0xff]
        %v1499 = vpack.c.bf16 %v1494, %v1494
        %1500 = vmatprep.subr.bf16.mxu0 %v863
        %1501 = vmatpush1.bf16.msra.mxu0 %v862
        %1502 = vmatprep.subr.bf16.mxu0 %v866
        %1503 = vmatpush1.bf16.msra.mxu0 %v865
        %1504 = vmatprep.subr.bf16.mxu0 %v869
        %1505 = vmatpush1.bf16.msra.mxu0 %v868
        %1506 = vmatprep.subr.bf16.mxu0 %v872
        %1507 = vmatpush1.bf16.msra.mxu0 %v871
        %1508 = vmatprep.subr.bf16.mxu0 %v875
        %1509 = vmatpush1.bf16.msra.mxu0 %v874
        %1510 = vmatprep.subr.bf16.mxu0 %v878
        %1511 = vmatpush1.bf16.msra.mxu0 %v877
        %1512 = vmatprep.subr.bf16.mxu0 %v881
        %1513 = vmatpush1.bf16.msra.mxu0 %v880
        %1514 = vmatprep.subr.bf16.mxu0 %v884
        %1515 = vmatpush1.bf16.msra.mxu0 %v883
        %1516 = vmatprep.subr.bf16.mxu0 0
        %1517 = vmatpush1.bf16.msra.mxu0 0
        %1518 = vmatprep.subr.bf16.mxu0 0
        %1519 = vmatpush1.bf16.msra.mxu0 0
        %1520 = vmatprep.subr.bf16.mxu0 0
        %1521 = vmatpush1.bf16.msra.mxu0 0
        %1522 = vmatprep.subr.bf16.mxu0 0
        %1523 = vmatpush1.bf16.msra.mxu0 0
        %1524 = vmatprep.subr.bf16.mxu0 0
        %1525 = vmatpush1.bf16.msra.mxu0 0
        %1526 = vmatprep.subr.bf16.mxu0 0
        %1527 = vmatpush1.bf16.msra.mxu0 0
        %1528 = vmatprep.subr.bf16.mxu0 0
        %1529 = vmatpush1.bf16.msra.mxu0 0
        %1530 = vmatprep.subr.bf16.mxu0 0
        %1531 = vmatpush1.bf16.msra.mxu0 0
        %1532 = vmatprep.mubr.bf16.mxu0 0
        %1533 = vmatmul.mubr.bf16.gmra.mrb[0].mxu0 %v1499
        %v1534 = vpop.f32.mrb[0].mxu0
        %v1535 = vadd.f32 0.0, %v1534
        %v1536 = vpop.f32.mrb[0].mxu0
        %v1537 = vadd.f32 0.0, %v1536
        %v1538 = vpop.f32.mrb[0].mxu0
        %v1539 = vpop.f32.mrb[0].mxu0
        %1540 = vdwg.mxu0
        %1541 = vmatprep.subr.bf16.mxu0 0
        %1542 = vmatpush1.bf16.msra.mxu0 %v864
        %1543 = vmatprep.subr.bf16.mxu0 0
        %1544 = vmatpush1.bf16.msra.mxu0 %v867
        %1545 = vmatprep.subr.bf16.mxu0 0
        %1546 = vmatpush1.bf16.msra.mxu0 %v870
        %1547 = vmatprep.subr.bf16.mxu0 0
        %1548 = vmatpush1.bf16.msra.mxu0 %v873
        %1549 = vmatprep.subr.bf16.mxu0 0
        %1550 = vmatpush1.bf16.msra.mxu0 %v876
        %1551 = vmatprep.subr.bf16.mxu0 0
        %1552 = vmatpush1.bf16.msra.mxu0 %v879
        %1553 = vmatprep.subr.bf16.mxu0 0
        %1554 = vmatpush1.bf16.msra.mxu0 %v882
        %1555 = vmatprep.subr.bf16.mxu0 0
        %1556 = vmatpush1.bf16.msra.mxu0 %v885
        %1557 = vmatprep.subr.bf16.mxu0 0
        %1558 = vmatpush1.bf16.msra.mxu0 0
        %1559 = vmatprep.subr.bf16.mxu0 0
        %1560 = vmatpush1.bf16.msra.mxu0 0
        %1561 = vmatprep.subr.bf16.mxu0 0
        %1562 = vmatpush1.bf16.msra.mxu0 0
        %1563 = vmatprep.subr.bf16.mxu0 0
        %1564 = vmatpush1.bf16.msra.mxu0 0
        %1565 = vmatprep.subr.bf16.mxu0 0
        %1566 = vmatpush1.bf16.msra.mxu0 0
        %1567 = vmatprep.subr.bf16.mxu0 0
        %1568 = vmatpush1.bf16.msra.mxu0 0
        %1569 = vmatprep.subr.bf16.mxu0 0
        %1570 = vmatpush1.bf16.msra.mxu0 0
        %1571 = vmatprep.subr.bf16.mxu0 0
        %1572 = vmatpush1.bf16.msra.mxu0 0
        %1573 = vmatprep.mubr.bf16.mxu0 0
        %1574 = vmatmul.mubr.bf16.gmra.mrb[0].mxu0 %v1499
        %v1575 = vpop.f32.mrb[0].mxu0
        %v1576 = vadd.f32 0.0, %v1575
        %v1577 = vpop.f32.mrb[0].mxu0
        %v1578 = vpop.f32.mrb[0].mxu0
        %v1579 = vpop.f32.mrb[0].mxu0
        %1580 = vdwg.mxu0
        %v1581 = vadd.f32 %v1496, %v1535
        %v1582 = vxor.u32 %v1581, 2147483648
        %v1583 = vmul.f32 %v1582, 1.442695
        %v1584 = vpow.pop %v1583
        %v1585 = vadd.f32 %v1584, 1.0
        %v1586 = vrcp.pop %v1585
        %v1587 = vmul.f32 1.0, %v1586
        %v1588 = vadd.f32 %v1497, %v1537
        %v1589 = vxor.u32 %v1588, 2147483648
        %v1590 = vmul.f32 %v1589, 1.442695
        %v1591 = vpow.pop %v1590
        %v1592 = vadd.f32 %v1591, 1.0
        %v1593 = vrcp.pop %v1592
        %v1594 = vmul.f32 1.0, %v1593
        %v1595 = vadd.f32 %v1576, %v1009
        %v1596 = vmul.f32 %v1587, %v1595
        %v1597 = vadd.f32 %v1498, %v1596
        %v1598 = vtanh.pop %v1597
        %v1599 = vsub.f32 1.0, %v1594
        %v1600 = vmul.f32 %v1599, %v1598
        %v1601 = vmul.f32 %v1594, %v1494
        %v1602 = vadd.f32 %v1600, %v1601
        %s1603 = sadd.s32 %s776, 5
        %v1604 = vstv %s1603
        %vm1605 = vcmp.gt.s32.totalorder %v742, %v1604
        %v1606 = vsel %vm1605, 1, 0
        %1607 = vset.pattern.permute.xlu0 0
        %1608 = vperm.xlu0 %1607, %v1606
        %v1609 = vpop.permute.xlu0 %1608
        %vm1610 = vcmp.eq.s32.totalorder %v1609, 1
        %v1611 = vsel %vm1610, %v1602, %v1494
        %s1612 = scalar_lea.vmem [#allocation3], 144
        %v1613 = vld [vmem:[%s1612] sm:$0xff]
        %v1614 = vld [vmem:[%s1612 + $0x8] sm:$0xff]
        %v1615 = vld [vmem:[%s1612 + $0x10] sm:$0xff]
        %v1616 = vpack.c.bf16 %v1611, %v1611
        %1617 = vmatprep.subr.bf16.mxu0 %v863
        %1618 = vmatpush1.bf16.msra.mxu0 %v862
        %1619 = vmatprep.subr.bf16.mxu0 %v866
        %1620 = vmatpush1.bf16.msra.mxu0 %v865
        %1621 = vmatprep.subr.bf16.mxu0 %v869
        %1622 = vmatpush1.bf16.msra.mxu0 %v868
        %1623 = vmatprep.subr.bf16.mxu0 %v872
        %1624 = vmatpush1.bf16.msra.mxu0 %v871
        %1625 = vmatprep.subr.bf16.mxu0 %v875
        %1626 = vmatpush1.bf16.msra.mxu0 %v874
        %1627 = vmatprep.subr.bf16.mxu0 %v878
        %1628 = vmatpush1.bf16.msra.mxu0 %v877
        %1629 = vmatprep.subr.bf16.mxu0 %v881
        %1630 = vmatpush1.bf16.msra.mxu0 %v880
        %1631 = vmatprep.subr.bf16.mxu0 %v884
        %1632 = vmatpush1.bf16.msra.mxu0 %v883
        %1633 = vmatprep.subr.bf16.mxu0 0
        %1634 = vmatpush1.bf16.msra.mxu0 0
        %1635 = vmatprep.subr.bf16.mxu0 0
        %1636 = vmatpush1.bf16.msra.mxu0 0
        %1637 = vmatprep.subr.bf16.mxu0 0
        %1638 = vmatpush1.bf16.msra.mxu0 0
        %1639 = vmatprep.subr.bf16.mxu0 0
        %1640 = vmatpush1.bf16.msra.mxu0 0
        %1641 = vmatprep.subr.bf16.mxu0 0
        %1642 = vmatpush1.bf16.msra.mxu0 0
        %1643 = vmatprep.subr.bf16.mxu0 0
        %1644 = vmatpush1.bf16.msra.mxu0 0
        %1645 = vmatprep.subr.bf16.mxu0 0
        %1646 = vmatpush1.bf16.msra.mxu0 0
        %1647 = vmatprep.subr.bf16.mxu0 0
        %1648 = vmatpush1.bf16.msra.mxu0 0
        %1649 = vmatprep.mubr.bf16.mxu0 0
        %1650 = vmatmul.mubr.bf16.gmra.mrb[0].mxu0 %v1616
        %v1651 = vpop.f32.mrb[0].mxu0
        %v1652 = vadd.f32 0.0, %v1651
        %v1653 = vpop.f32.mrb[0].mxu0
        %v1654 = vadd.f32 0.0, %v1653
        %v1655 = vpop.f32.mrb[0].mxu0
        %v1656 = vpop.f32.mrb[0].mxu0
        %1657 = vdwg.mxu0
        %1658 = vmatprep.subr.bf16.mxu0 0
        %1659 = vmatpush1.bf16.msra.mxu0 %v864
        %1660 = vmatprep.subr.bf16.mxu0 0
        %1661 = vmatpush1.bf16.msra.mxu0 %v867
        %1662 = vmatprep.subr.bf16.mxu0 0
        %1663 = vmatpush1.bf16.msra.mxu0 %v870
        %1664 = vmatprep.subr.bf16.mxu0 0
        %1665 = vmatpush1.bf16.msra.mxu0 %v873
        %1666 = vmatprep.subr.bf16.mxu0 0
        %1667 = vmatpush1.bf16.msra.mxu0 %v876
        %1668 = vmatprep.subr.bf16.mxu0 0
        %1669 = vmatpush1.bf16.msra.mxu0 %v879
        %1670 = vmatprep.subr.bf16.mxu0 0
        %1671 = vmatpush1.bf16.msra.mxu0 %v882
        %1672 = vmatprep.subr.bf16.mxu0 0
        %1673 = vmatpush1.bf16.msra.mxu0 %v885
        %1674 = vmatprep.subr.bf16.mxu0 0
        %1675 = vmatpush1.bf16.msra.mxu0 0
        %1676 = vmatprep.subr.bf16.mxu0 0
        %1677 = vmatpush1.bf16.msra.mxu0 0
        %1678 = vmatprep.subr.bf16.mxu0 0
        %1679 = vmatpush1.bf16.msra.mxu0 0
        %1680 = vmatprep.subr.bf16.mxu0 0
        %1681 = vmatpush1.bf16.msra.mxu0 0
        %1682 = vmatprep.subr.bf16.mxu0 0
        %1683 = vmatpush1.bf16.msra.mxu0 0
        %1684 = vmatprep.subr.bf16.mxu0 0
        %1685 = vmatpush1.bf16.msra.mxu0 0
        %1686 = vmatprep.subr.bf16.mxu0 0
        %1687 = vmatpush1.bf16.msra.mxu0 0
        %1688 = vmatprep.subr.bf16.mxu0 0
        %1689 = vmatpush1.bf16.msra.mxu0 0
        %1690 = vmatprep.mubr.bf16.mxu0 0
        %1691 = vmatmul.mubr.bf16.gmra.mrb[0].mxu0 %v1616
        %v1692 = vpop.f32.mrb[0].mxu0
        %v1693 = vadd.f32 0.0, %v1692
        %v1694 = vpop.f32.mrb[0].mxu0
        %v1695 = vpop.f32.mrb[0].mxu0
        %v1696 = vpop.f32.mrb[0].mxu0
        %1697 = vdwg.mxu0
        %v1698 = vadd.f32 %v1613, %v1652
        %v1699 = vxor.u32 %v1698, 2147483648
        %v1700 = vmul.f32 %v1699, 1.442695
        %v1701 = vpow.pop %v1700
        %v1702 = vadd.f32 %v1701, 1.0
        %v1703 = vrcp.pop %v1702
        %v1704 = vmul.f32 1.0, %v1703
        %v1705 = vadd.f32 %v1614, %v1654
        %v1706 = vxor.u32 %v1705, 2147483648
        %v1707 = vmul.f32 %v1706, 1.442695
        %v1708 = vpow.pop %v1707
        %v1709 = vadd.f32 %v1708, 1.0
        %v1710 = vrcp.pop %v1709
        %v1711 = vmul.f32 1.0, %v1710
        %v1712 = vadd.f32 %v1693, %v1009
        %v1713 = vmul.f32 %v1704, %v1712
        %v1714 = vadd.f32 %v1615, %v1713
        %v1715 = vtanh.pop %v1714
        %v1716 = vsub.f32 1.0, %v1711
        %v1717 = vmul.f32 %v1716, %v1715
        %v1718 = vmul.f32 %v1711, %v1611
        %v1719 = vadd.f32 %v1717, %v1718
        %s1720 = sadd.s32 %s776, 6
        %v1721 = vstv %s1720
        %vm1722 = vcmp.gt.s32.totalorder %v742, %v1721
        %v1723 = vsel %vm1722, 1, 0
        %1724 = vset.pattern.permute.xlu0 0
        %1725 = vperm.xlu0 %1724, %v1723
        %v1726 = vpop.permute.xlu0 %1725
        %vm1727 = vcmp.eq.s32.totalorder %v1726, 1
        %v1728 = vsel %vm1727, %v1719, %v1611
        %s1729 = scalar_lea.vmem [#allocation3], 168
        %v1730 = vld [vmem:[%s1729] sm:$0xff]
        %v1731 = vld [vmem:[%s1729 + $0x8] sm:$0xff]
        %v1732 = vld [vmem:[%s1729 + $0x10] sm:$0xff]
        %v1733 = vpack.c.bf16 %v1728, %v1728
        %1734 = vmatprep.subr.bf16.mxu0 %v863
        %1735 = vmatpush1.bf16.msra.mxu0 %v862
        %1736 = vmatprep.subr.bf16.mxu0 %v866
        %1737 = vmatpush1.bf16.msra.mxu0 %v865
        %1738 = vmatprep.subr.bf16.mxu0 %v869
        %1739 = vmatpush1.bf16.msra.mxu0 %v868
        %1740 = vmatprep.subr.bf16.mxu0 %v872
        %1741 = vmatpush1.bf16.msra.mxu0 %v871
        %1742 = vmatprep.subr.bf16.mxu0 %v875
        %1743 = vmatpush1.bf16.msra.mxu0 %v874
        %1744 = vmatprep.subr.bf16.mxu0 %v878
        %1745 = vmatpush1.bf16.msra.mxu0 %v877
        %1746 = vmatprep.subr.bf16.mxu0 %v881
        %1747 = vmatpush1.bf16.msra.mxu0 %v880
        %1748 = vmatprep.subr.bf16.mxu0 %v884
        %1749 = vmatpush1.bf16.msra.mxu0 %v883
        %1750 = vmatprep.subr.bf16.mxu0 0
        %1751 = vmatpush1.bf16.msra.mxu0 0
        %1752 = vmatprep.subr.bf16.mxu0 0
        %1753 = vmatpush1.bf16.msra.mxu0 0
        %1754 = vmatprep.subr.bf16.mxu0 0
        %1755 = vmatpush1.bf16.msra.mxu0 0
        %1756 = vmatprep.subr.bf16.mxu0 0
        %1757 = vmatpush1.bf16.msra.mxu0 0
        %1758 = vmatprep.subr.bf16.mxu0 0
        %1759 = vmatpush1.bf16.msra.mxu0 0
        %1760 = vmatprep.subr.bf16.mxu0 0
        %1761 = vmatpush1.bf16.msra.mxu0 0
        %1762 = vmatprep.subr.bf16.mxu0 0
        %1763 = vmatpush1.bf16.msra.mxu0 0
        %1764 = vmatprep.subr.bf16.mxu0 0
        %1765 = vmatpush1.bf16.msra.mxu0 0
        %1766 = vmatprep.mubr.bf16.mxu0 0
        %1767 = vmatmul.mubr.bf16.gmra.mrb[0].mxu0 %v1733
        %v1768 = vpop.f32.mrb[0].mxu0
        %v1769 = vadd.f32 0.0, %v1768
        %v1770 = vpop.f32.mrb[0].mxu0
        %v1771 = vadd.f32 0.0, %v1770
        %v1772 = vpop.f32.mrb[0].mxu0
        %v1773 = vpop.f32.mrb[0].mxu0
        %1774 = vdwg.mxu0
        %1775 = vmatprep.subr.bf16.mxu0 0
        %1776 = vmatpush1.bf16.msra.mxu0 %v864
        %1777 = vmatprep.subr.bf16.mxu0 0
        %1778 = vmatpush1.bf16.msra.mxu0 %v867
        %1779 = vmatprep.subr.bf16.mxu0 0
        %1780 = vmatpush1.bf16.msra.mxu0 %v870
        %1781 = vmatprep.subr.bf16.mxu0 0
        %1782 = vmatpush1.bf16.msra.mxu0 %v873
        %1783 = vmatprep.subr.bf16.mxu0 0
        %1784 = vmatpush1.bf16.msra.mxu0 %v876
        %1785 = vmatprep.subr.bf16.mxu0 0
        %1786 = vmatpush1.bf16.msra.mxu0 %v879
        %1787 = vmatprep.subr.bf16.mxu0 0
        %1788 = vmatpush1.bf16.msra.mxu0 %v882
        %1789 = vmatprep.subr.bf16.mxu0 0
        %1790 = vmatpush1.bf16.msra.mxu0 %v885
        %1791 = vmatprep.subr.bf16.mxu0 0
        %1792 = vmatpush1.bf16.msra.mxu0 0
        %1793 = vmatprep.subr.bf16.mxu0 0
        %1794 = vmatpush1.bf16.msra.mxu0 0
        %1795 = vmatprep.subr.bf16.mxu0 0
        %1796 = vmatpush1.bf16.msra.mxu0 0
        %1797 = vmatprep.subr.bf16.mxu0 0
        %1798 = vmatpush1.bf16.msra.mxu0 0
        %1799 = vmatprep.subr.bf16.mxu0 0
        %1800 = vmatpush1.bf16.msra.mxu0 0
        %1801 = vmatprep.subr.bf16.mxu0 0
        %1802 = vmatpush1.bf16.msra.mxu0 0
        %1803 = vmatprep.subr.bf16.mxu0 0
        %1804 = vmatpush1.bf16.msra.mxu0 0
        %1805 = vmatprep.subr.bf16.mxu0 0
        %1806 = vmatpush1.bf16.msra.mxu0 0
        %1807 = vmatprep.mubr.bf16.mxu0 0
        %1808 = vmatmul.mubr.bf16.gmra.mrb[0].mxu0 %v1733
        %v1809 = vpop.f32.mrb[0].mxu0
        %v1810 = vadd.f32 0.0, %v1809
        %v1811 = vpop.f32.mrb[0].mxu0
        %v1812 = vpop.f32.mrb[0].mxu0
        %v1813 = vpop.f32.mrb[0].mxu0
        %1814 = vdwg.mxu0
        %v1815 = vadd.f32 %v1730, %v1769
        %v1816 = vxor.u32 %v1815, 2147483648
        %v1817 = vmul.f32 %v1816, 1.442695
        %v1818 = vpow.pop %v1817
        %v1819 = vadd.f32 %v1818, 1.0
        %v1820 = vrcp.pop %v1819
        %v1821 = vmul.f32 1.0, %v1820
        %v1822 = vadd.f32 %v1731, %v1771
        %v1823 = vxor.u32 %v1822, 2147483648
        %v1824 = vmul.f32 %v1823, 1.442695
        %v1825 = vpow.pop %v1824
        %v1826 = vadd.f32 %v1825, 1.0
        %v1827 = vrcp.pop %v1826
        %v1828 = vmul.f32 1.0, %v1827
        %v1829 = vadd.f32 %v1810, %v1009
        %v1830 = vmul.f32 %v1821, %v1829
        %v1831 = vadd.f32 %v1732, %v1830
        %v1832 = vtanh.pop %v1831
        %v1833 = vsub.f32 1.0, %v1828
        %v1834 = vmul.f32 %v1833, %v1832
        %v1835 = vmul.f32 %v1828, %v1728
        %v1836 = vadd.f32 %v1834, %v1835
        %s1837 = sadd.s32 %s776, 7
        %v1838 = vstv %s1837
        %vm1839 = vcmp.gt.s32.totalorder %v742, %v1838
        %v1840 = vsel %vm1839, 1, 0
        %1841 = vset.pattern.permute.xlu0 0
        %1842 = vperm.xlu0 %1841, %v1840
        %v1843 = vpop.permute.xlu0 %1842
        %vm1844 = vcmp.eq.s32.totalorder %v1843, 1
        %v1845 = vsel %vm1844, %v1836, %v1728
        %1846 = vst [vmem:[#allocation2] sm:$0xff] %v1845
        %p1847 = scmp.eq.s32.totalorder %s32, 1
        // Predicated region
        $region97: #{tpu_custom_call.1} parent=55 // pred_check
          %p1848 = pneg %p1847
        $region98: #{tpu_custom_call.1} parent=55 // pred_check_branch
          %1850 = sbr.rel (%p1848) target = $region100
        $region99: #{tpu_custom_call.1} parent=55 // pred_region
          %v1851 = vpack.c.bf16 %v1845, %v1845
          %v1852 = vld [vmem:[#allocation15] sm:$0xff]
          %v1853 = vld [vmem:[#allocation15 + $0x8] sm:$0xff]
          %v1854 = vld [vmem:[#allocation15 + $0x10] sm:$0xff]
          %v1855 = vld [vmem:[#allocation15 + $0x18] sm:$0xff]
          %v1856 = vld [vmem:[#allocation15 + $0x20] sm:$0xff]
          %v1857 = vld [vmem:[#allocation15 + $0x28] sm:$0xff]
          %v1858 = vld [vmem:[#allocation15 + $0x30] sm:$0xff]
          %v1859 = vld [vmem:[#allocation15 + $0x38] sm:$0xff]
          %v1860 = vld [vmem:[#allocation15 + $0x40] sm:$0xff]
          %v1861 = vld [vmem:[#allocation15 + $0x48] sm:$0xff]
          %v1862 = vld [vmem:[#allocation15 + $0x50] sm:$0xff]
          %v1863 = vld [vmem:[#allocation15 + $0x58] sm:$0xff]
          %v1864 = vld [vmem:[#allocation15 + $0x60] sm:$0xff]
          %v1865 = vld [vmem:[#allocation15 + $0x68] sm:$0xff]
          %v1866 = vld [vmem:[#allocation15 + $0x70] sm:$0xff]
          %v1867 = vld [vmem:[#allocation15 + $0x78] sm:$0xff]
          %v1868 = vld [vmem:[#allocation16] sm:$0x3]
          %v1870 = vlaneseq
          %v1871 = vshrl.u32 %v1870, 7
          %v1872 = vsub.s32 0, %v1871
          %v1873 = vrot.slane %v1868, %v1872
          %v1874 = vlaneseq
          %v1875 = vshrl.u32 %v1874, 7
          %v1876 = vsub.s32 1, %v1875
          %v1877 = vrot.slane %v1868, %v1876
          %v1896 = vunpack.c.l.b16 %v1852
          %v1897 = vunpack.c.h.b16 %v1852
          %v1898 = vunpack.c.l.b16 %v1853
          %v1899 = vunpack.c.h.b16 %v1853
          %v1900 = vunpack.c.l.b16 %v1854
          %v1901 = vunpack.c.h.b16 %v1854
          %v1902 = vunpack.c.l.b16 %v1855
          %v1903 = vunpack.c.h.b16 %v1855
          %v1904 = vunpack.c.l.b16 %v1856
          %v1905 = vunpack.c.h.b16 %v1856
          %v1906 = vunpack.c.l.b16 %v1857
          %v1907 = vunpack.c.h.b16 %v1857
          %v1908 = vunpack.c.l.b16 %v1858
          %v1909 = vunpack.c.h.b16 %v1858
          %v1910 = vunpack.c.l.b16 %v1859
          %v1911 = vunpack.c.h.b16 %v1859
          %v1912 = vunpack.c.l.b16 %v1860
          %v1913 = vunpack.c.h.b16 %v1860
          %v1914 = vunpack.c.l.b16 %v1861
          %v1915 = vunpack.c.h.b16 %v1861
          %v1916 = vunpack.c.l.b16 %v1862
          %v1917 = vunpack.c.h.b16 %v1862
          %v1918 = vunpack.c.l.b16 %v1863
          %v1919 = vunpack.c.h.b16 %v1863
          %v1920 = vunpack.c.l.b16 %v1864
          %v1921 = vunpack.c.h.b16 %v1864
          %v1922 = vunpack.c.l.b16 %v1865
          %v1923 = vunpack.c.h.b16 %v1865
          %v1924 = vunpack.c.l.b16 %v1866
          %v1925 = vunpack.c.h.b16 %v1866
          %v1926 = vunpack.c.l.b16 %v1867
          %v1927 = vunpack.c.h.b16 %v1867
          %v1928 = vpack.c.b16 %v1898, %v1896
          %v1929 = vpack.c.b16 %v1899, %v1897
          %v1930 = vpack.c.b16 %v1902, %v1900
          %v1931 = vpack.c.b16 %v1903, %v1901
          %v1932 = vpack.c.b16 %v1906, %v1904
          %v1933 = vpack.c.b16 %v1907, %v1905
          %v1934 = vpack.c.b16 %v1910, %v1908
          %v1935 = vpack.c.b16 %v1911, %v1909
          %v1936 = vpack.c.b16 %v1914, %v1912
          %v1937 = vpack.c.b16 %v1915, %v1913
          %v1938 = vpack.c.b16 %v1918, %v1916
          %v1939 = vpack.c.b16 %v1919, %v1917
          %v1940 = vpack.c.b16 %v1922, %v1920
          %v1941 = vpack.c.b16 %v1923, %v1921
          %v1942 = vpack.c.b16 %v1926, %v1924
          %v1943 = vpack.c.b16 %v1927, %v1925
          %1960 = vmatprep.subr.bf16.mxu0 %v1929
          %1961 = vmatpush1.bf16.msra.mxu0 %v1928
          %1962 = vmatprep.subr.bf16.mxu0 %v1931
          %1963 = vmatpush1.bf16.msra.mxu0 %v1930
          %1964 = vmatprep.subr.bf16.mxu0 %v1933
          %1965 = vmatpush1.bf16.msra.mxu0 %v1932
          %1966 = vmatprep.subr.bf16.mxu0 %v1935
          %1967 = vmatpush1.bf16.msra.mxu0 %v1934
          %1968 = vmatprep.subr.bf16.mxu0 %v1937
          %1969 = vmatpush1.bf16.msra.mxu0 %v1936
          %1970 = vmatprep.subr.bf16.mxu0 %v1939
          %1971 = vmatpush1.bf16.msra.mxu0 %v1938
          %1972 = vmatprep.subr.bf16.mxu0 %v1941
          %1973 = vmatpush1.bf16.msra.mxu0 %v1940
          %1974 = vmatprep.subr.bf16.mxu0 %v1943
          %1975 = vmatpush1.bf16.msra.mxu0 %v1942
          %1976 = vmatprep.subr.bf16.mxu0 0
          %1977 = vmatpush1.bf16.msra.mxu0 0
          %1978 = vmatprep.subr.bf16.mxu0 0
          %1979 = vmatpush1.bf16.msra.mxu0 0
          %1980 = vmatprep.subr.bf16.mxu0 0
          %1981 = vmatpush1.bf16.msra.mxu0 0
          %1982 = vmatprep.subr.bf16.mxu0 0
          %1983 = vmatpush1.bf16.msra.mxu0 0
          %1984 = vmatprep.subr.bf16.mxu0 0
          %1985 = vmatpush1.bf16.msra.mxu0 0
          %1986 = vmatprep.subr.bf16.mxu0 0
          %1987 = vmatpush1.bf16.msra.mxu0 0
          %1988 = vmatprep.subr.bf16.mxu0 0
          %1989 = vmatpush1.bf16.msra.mxu0 0
          %1990 = vmatprep.subr.bf16.mxu0 0
          %1991 = vmatpush1.bf16.msra.mxu0 0
          %1992 = vmatprep.mubr.bf16.mxu0 0
          %1993 = vmatmul.mubr.bf16.gmra.mrb[0].mxu0 %v1851
          %v1994 = vpop.f32.mrb[0].mxu0
          %v1995 = vadd.f32 %v1873, %v1994
          %v1996 = vpop.f32.mrb[0].mxu0
          %v1997 = vadd.f32 %v1877, %v1996
          %v1998 = vpop.f32.mrb[0].mxu0
          %v1999 = vpop.f32.mrb[0].mxu0
          %2000 = vdwg.mxu0
          %2001 = vst [vmem:[#allocation19] sm:$0xff] %v1995
          %2002 = vst [vmem:[#allocation20] sm:$0xff] %v1997
          %v2003 = vld [vmem:[#allocation18] sm:$0xff]
          %v2004 = vmul.f32 %v1997, 0.5
          %v2005 = vmul.f32 %v2004, 1.442695
          %v2006 = vpow.pop %v2005
          %v2007 = vmul.f32 %v2003, %v2006
          %v2008 = vadd.f32 %v2007, %v1995
          %2009 = vst [vmem:[#allocation22] sm:$0xff] %v2008
        $region100: #{tpu_custom_call.1} parent=55 // pred_fallthru
          _
        // Predicated region
        $region101: #{tpu_custom_call.1} parent=55 // pred_check
          %p2010 = pneg %p239
        $region102: #{tpu_custom_call.1} parent=55 // pred_check_branch
          %2012 = sbr.rel (%p2010) target = $region104
        $region103: #{tpu_custom_call.1} parent=55 // pred_region
          %s2014 = ssub.s32 128, 128
          %2015 = vsyncadd [#allocation6], %s2014
          %s2017 = sshll.u32 [#allocation19], 4
          %s2018 = int_to_ptr.vmem [resolvable:$true] %s2017
          %2020 = dma.vmem_to_hbm [thread:$0]  %s2018, 128, %s9, [#allocation6]
        $region104: #{tpu_custom_call.1} parent=55 // pred_fallthru
          _
        // Predicated region
        $region105: #{tpu_custom_call.1} parent=55 // pred_check
          %p2021 = pneg %p260
        $region106: #{tpu_custom_call.1} parent=55 // pred_check_branch
          %2023 = sbr.rel (%p2021) target = $region108
        $region107: #{tpu_custom_call.1} parent=55 // pred_region
          %s2025 = ssub.s32 128, 128
          %2026 = vsyncadd [#allocation21], %s2025
          %s2028 = sshll.u32 [#allocation20], 4
          %s2029 = int_to_ptr.vmem [resolvable:$true] %s2028
          %2031 = dma.vmem_to_hbm [thread:$0]  %s2029, 128, %s10, [#allocation21]
        $region108: #{tpu_custom_call.1} parent=55 // pred_fallthru
          _
        // Predicated region
        $region109: #{tpu_custom_call.1} parent=55 // pred_check
          %p2032 = pneg %p281
        $region110: #{tpu_custom_call.1} parent=55 // pred_check_branch
          %2034 = sbr.rel (%p2032) target = $region112
        $region111: #{tpu_custom_call.1} parent=55 // pred_region
          %s2036 = ssub.s32 128, 128
          %2037 = vsyncadd [#allocation21], %s2036
          %s2039 = sshll.u32 [#allocation22], 4
          %s2040 = int_to_ptr.vmem [resolvable:$true] %s2039
          %2042 = dma.vmem_to_hbm [thread:$0]  %s2040, 128, %s11, [#allocation21]
        $region112: #{tpu_custom_call.1} parent=55 // pred_fallthru
          _
        // Predicated region
        $region113: #{tpu_custom_call.1} parent=55 // pred_check
          %p2043 = pneg %p239
        $region114: #{tpu_custom_call.1} parent=55 // pred_check_branch
          %2045 = sbr.rel (%p2043) target = $region116
        $region115: #{tpu_custom_call.1} parent=55 // pred_region
          %2046 = dma.done [#allocation6], 128
        $region116: #{tpu_custom_call.1} parent=55 // pred_fallthru
          _
        // Predicated region
        $region117: #{tpu_custom_call.1} parent=55 // pred_check
          %p2047 = pneg %p260
        $region118: #{tpu_custom_call.1} parent=55 // pred_check_branch
          %2049 = sbr.rel (%p2047) target = $region120
        $region119: #{tpu_custom_call.1} parent=55 // pred_region
          %2050 = dma.done [#allocation21], 128
        $region120: #{tpu_custom_call.1} parent=55 // pred_fallthru
          _
        // Predicated region
        $region121: #{tpu_custom_call.1} parent=55 // pred_check
          %p2051 = pneg %p281
        $region122: #{tpu_custom_call.1} parent=55 // pred_check_branch
          %2053 = sbr.rel (%p2051) target = $region124
        $region123: #{tpu_custom_call.1} parent=55 // pred_region
          %2054 = dma.done [#allocation21], 128
        $region124: #{tpu_custom_call.1} parent=55 // pred_fallthru
          _
      $region56: #{tpu_custom_call.1} parent=5 // pred_fallthru
        _
      %p2055 = scmp.le.s32.totalorder 2, %s27
      // Predicated region
      $region125: #{tpu_custom_call.1} parent=5 // pred_check
        %p2056 = pneg %p2055
      $region126: #{tpu_custom_call.1} parent=5 // pred_check_branch
        %2058 = sbr.rel (%p2056) target = $region128
      $region127: #{tpu_custom_call.1} parent=5 // pred_region
        %s2059 = ssub.s32 %s27, 2
      $region128: #{tpu_custom_call.1} parent=5 // pred_fallthru
        _
    $region6: #{tpu_custom_call.1} parent=1 // loop_footer
      %s31 = sadd.s32 1, %s27
    $region7: #{tpu_custom_call.1} parent=1 // loop_footer_branch
      %26 = sbr.rel target = $region3
    $region8: #{tpu_custom_call.1} parent=1 // loop_exit
      _
    %2060 = vsyncpa [#allocation5], 1
    %s2061 = scalar_lea.sflag [#allocation5], 1
    %2062 = vsyncpa %s2061, 1
    %2063 = vsyncpa [#allocation8], 1
    %2064 = vsyncpa [#allocation11], 1
    %2065 = vsyncpa [#allocation14], 1
    %2066 = vsyncpa [#allocation17], 1
    %2067 = vsyncpa [#allocation6], 1
    %s2068 = scalar_lea.sflag [#allocation6], 1
    %2069 = vsyncpa %s2068, 1
    %2070 = vsyncpa [#allocation21], 1

</llo_original>
